<compile_context>
chip_gen: v5e
topology: v5e:2x2
jax: 0.10.0
libtpu: 0.0.40
codegen_flags: <defaults>
</compile_context>

<pallas_src>
import functools

import jax
import jax.numpy as jnp
from jax import lax
from jax.experimental import pallas as pl
from jax.experimental.pallas import tpu as pltpu


def greedy_seq_t2v_kernel(x1_ref, x2_ref, w_ref, wd_ref, p_ref, out_ref,
                          *, W, Nb, I, H, LC, PC):
    """One batch block per grid step; everything for a block fits in VMEM.

    x1_ref : (W, Nb, I)   time-major block (x1_ref[t] = block rows at time t)
    x2_ref : (Nb, 1)
    w_ref  : (I+H, 4H)    [W_ih^T ; W_hh^T], g-gate columns pre-scaled by 2
    wd_ref : (LC+PC, H)   Wd^T
    p_ref  : (7, PW)      packed small vectors (see wrapper)
    out_ref: (Nb, 1)
    """
    H4 = 4 * H
    TC = LC + PC

    # ---------------- LSTM ----------------
    w_ih = w_ref[0:I, :]            # (I, 4H)
    w_hh = w_ref[I:I + H, :]        # (H, 4H)
    b = p_ref[0:1, 0:H4]            # (1, 4H) = (b_ih + b_hh), g slice pre-scaled by 2

    # Hoisted input projection + folded bias: one matmul, off the serial chain.
    x1_rows = x1_ref[...].reshape(W * Nb, I)                     # (W*Nb, I)
    zx = jnp.dot(x1_rows, w_ih, preferred_element_type=jnp.float32) + b   # (W*Nb, 4H)

    h = jnp.zeros((Nb, H), jnp.float32)
    c = jnp.zeros((Nb, H), jnp.float32)
    # Fully unrolled recurrence (W static & small) -> full LLO scheduling visibility.
    # Gate slices are 32-lane sub-slices of one 128-lane vreg; if the bundle shows
    # relayout chains here, pre-align with pltpu.roll (XLU slot is idle in this loop).
    for t in range(W):
        z = zx[t * Nb:(t + 1) * Nb, :] + jnp.dot(
            h, w_hh, preferred_element_type=jnp.float32)         # (Nb, 4H)
        sg = jax.nn.sigmoid(z)                                   # single EUP call/step
        i_g = sg[:, 0 * H:1 * H]                                 # PyTorch order: i,f,g,o
        f_g = sg[:, 1 * H:2 * H]
        g_g = 2.0 * sg[:, 2 * H:3 * H] - 1.0                     # == tanh(z_g), VPU only
        o_g = sg[:, 3 * H:4 * H]
        c = f_g * c + i_g * g_g
        h = o_g * jnp.tanh(c)

    # ---------------- T2V(x2): fused, single MXU issue ----------------
    x2 = x2_ref[...]                                             # (Nb, 1)
    u = x2 * p_ref[1:2, 0:TC] + p_ref[2:3, 0:TC]                 # (Nb, LC+PC)
    lane = lax.broadcasted_iota(jnp.int32, (Nb, TC), 1)
    t2v = jnp.where(lane < LC, u, jnp.sin(u))                    # [linear | sin(periodic)]
    t2v_out = (jnp.dot(t2v, wd_ref[...], preferred_element_type=jnp.float32)
               + p_ref[3:4, 0:H])                                # (Nb, H)

    # -------- final dense(2H -> 1): VPU multiply + lane reduction (no MXU) --------
    contrib = h * p_ref[4:5, 0:H] + t2v_out * p_ref[5:6, 0:H]    # (Nb, H)
    out_ref[...] = jnp.sum(contrib, axis=-1, keepdims=True) + p_ref[6:7, 0:1]


def greedy_seq_t2v(x1, x2, params, *, block_n=None):
    """x1: (N, window, input_size), x2: (N, 1) -> (N,)"""
    N, W, I = x1.shape
    H = params["w_hh"].shape[1]
    LC = params["t2v_wl"].shape[0]
    PC = params["t2v_wp"].shape[0]
    H4 = 4 * H
    TC = LC + PC
    assert N % 8 == 0, "batch must be a multiple of 8 (sublane granularity)"

    # Batch block sizing: amortize the serial LSTM chain over as many rows as fit a
    # conservative per-block VMEM budget (zx dominates: W*Nb*4H f32, plus 2x-buffered
    # x1 blocks).  8 MiB keeps headroom under v5e's 16 MiB / v7x's 32 MiB default
    # scoped-VMEM limits without needing vmem_limit_bytes.
    if block_n is None:
        bytes_per_row = 4 * W * (H4 + 2 * I) + 64 * H4
        budget = 8 * 1024 * 1024
        block_n = max(8, min(N, (budget // bytes_per_row) // 8 * 8))
        while N % block_n:
            block_n -= 8
    assert block_n % 8 == 0 and N % block_n == 0, (N, block_n)
    grid_n = N // block_n

    # Time-major 3-D layout so a batch block is a rectangular BlockSpec tile and
    # per-step slabs stay contiguous sublane blocks.
    x1_t = jnp.transpose(x1, (1, 0, 2))                          # (W, N, I)

    # Pre-scale the g-gate columns by 2 (tanh(x) == 2*sigmoid(2x)-1 trick).
    gate_scale = jnp.ones((H4,), jnp.float32).at[2 * H:3 * H].set(2.0)
    w_cat = jnp.concatenate([params["w_ih"].T, params["w_hh"].T],
                            axis=0) * gate_scale[None, :]        # (I+H, 4H)
    wd_t = params["wd"].T                                        # (LC+PC, H)

    # Packed small-vector slab (lane-dense, one DMA):
    #  row 0: (b_ih+b_hh) * gate_scale | 1: [wl ; wp] | 2: [bl ; bp]
    #  row 3: bd | 4: wo[:, :H] | 5: wo[:, H:] | 6: bo
    PW = max(H4, TC, H, 1)
    pvec = jnp.zeros((7, PW), jnp.float32)
    pvec = pvec.at[0, :H4].set((params["b_ih"] + params["b_hh"]) * gate_scale)
    pvec = pvec.at[1, :LC].set(params["t2v_wl"][:, 0])
    pvec = pvec.at[1, LC:TC].set(params["t2v_wp"][:, 0])
    pvec = pvec.at[2, :LC].set(params["t2v_bl"])
    pvec = pvec.at[2, LC:TC].set(params["t2v_bp"])
    pvec = pvec.at[3, :H].set(params["bd"])
    pvec = pvec.at[4, :H].set(params["wo"][0, :H])
    pvec = pvec.at[5, :H].set(params["wo"][0, H:])
    pvec = pvec.at[6, 0].set(params["bo"][0])

    kernel = functools.partial(greedy_seq_t2v_kernel,
                               W=W, Nb=block_n, I=I, H=H, LC=LC, PC=PC)
    out = pl.pallas_call(
        kernel,
        out_shape=jax.ShapeDtypeStruct((N, 1), jnp.float32),
        grid_spec=pltpu.PrefetchScalarGridSpec(
            num_scalar_prefetch=0,
            grid=(grid_n,),
            in_specs=[
                pl.BlockSpec((W, block_n, I), lambda b: (0, b, 0)),   # x1 block
                pl.BlockSpec((block_n, 1), lambda b: (b, 0)),         # x2 block
                pl.BlockSpec((I + H, H4), lambda b: (0, 0)),          # [W_ih;W_hh]
                pl.BlockSpec((TC, H), lambda b: (0, 0)),              # Wd^T
                pl.BlockSpec((7, PW), lambda b: (0, 0)),              # param slab
            ],
            out_specs=pl.BlockSpec((block_n, 1), lambda b: (b, 0)),
        ),
        compiler_params=pltpu.CompilerParams(
            dimension_semantics=("parallel",),   # v7x: split batch over both TCs
        ),
    )(x1_t, x2, w_cat, wd_t, pvec)
    return out.reshape(-1)


def greedy_seq_t2v_ref(x1, x2, params):
    """Pure-JAX reference of the same forward pass (standard sigmoid/tanh gates)."""
    N, W, I = x1.shape
    H = params["w_hh"].shape[1]
    w_ih_t = params["w_ih"].T
    w_hh_t = params["w_hh"].T
    b = params["b_ih"] + params["b_hh"]
    h = jnp.zeros((N, H), jnp.float32)
    c = jnp.zeros((N, H), jnp.float32)
    for t in range(W):
        z = x1[:, t, :] @ w_ih_t + h @ w_hh_t + b
        i_g = jax.nn.sigmoid(z[:, 0 * H:1 * H])
        f_g = jax.nn.sigmoid(z[:, 1 * H:2 * H])
        g_g = jnp.tanh(z[:, 2 * H:3 * H])
        o_g = jax.nn.sigmoid(z[:, 3 * H:4 * H])
        c = f_g * c + i_g * g_g
        h = o_g * jnp.tanh(c)
    lin = x2 @ params["t2v_wl"].T + params["t2v_bl"]
    per = jnp.sin(x2 @ params["t2v_wp"].T + params["t2v_bp"])
    t2v = jnp.concatenate([lin, per], axis=-1)
    x2d = t2v @ params["wd"].T + params["bd"]
    cat = jnp.concatenate([h, x2d], axis=-1)
    # Linear(2H -> 1) as an exact f32 contraction; mirrors the kernel's VPU reduction
    # and avoids TPU default-matmul-precision ambiguity in the check.
    return jnp.sum(cat * params["wo"][0][None, :], axis=-1) + params["bo"][0]


def init_params(key, input_size, hidden_size, linear_channel, period_channel):
    ks = jax.random.split(key, 12)
    s = 0.1
    H, I, LC, PC = hidden_size, input_size, linear_channel, period_channel
    return {
        "w_ih": s * jax.random.normal(ks[0], (4 * H, I), jnp.float32),
        "w_hh": s * jax.random.normal(ks[1], (4 * H, H), jnp.float32),
        "b_ih": s * jax.random.normal(ks[2], (4 * H,), jnp.float32),
        "b_hh": s * jax.random.normal(ks[3], (4 * H,), jnp.float32),
        "t2v_wl": s * jax.random.normal(ks[4], (LC, 1), jnp.float32),
        "t2v_bl": s * jax.random.normal(ks[5], (LC,), jnp.float32),
        "t2v_wp": s * jax.random.normal(ks[6], (PC, 1), jnp.float32),
        "t2v_bp": s * jax.random.normal(ks[7], (PC,), jnp.float32),
        "wd": s * jax.random.normal(ks[8], (H, LC + PC), jnp.float32),
        "bd": s * jax.random.normal(ks[9], (H,), jnp.float32),
        "wo": s * jax.random.normal(ks[10], (1, 2 * H), jnp.float32),
        "bo": s * jax.random.normal(ks[11], (1,), jnp.float32),
    }


if __name__ == "__main__":
    # Small shapes: batch=16 (two blocks of 8 to exercise the parallel batch grid),
    # window=8, input_size=8, hidden=32, LC=PC=8, time_input_channel=1.
    N, W, I, H, LC, PC = 16, 8, 8, 32, 8, 8

    key = jax.random.PRNGKey(0)
    k1, k2, kp = jax.random.split(key, 3)
    x1 = jax.random.normal(k1, (N, W, I), jnp.float32)   # time-series values
    x2 = jax.random.normal(k2, (N, 1), jnp.float32)      # single time feature
    params = init_params(kp, I, H, LC, PC)

    out = jax.block_until_ready(greedy_seq_t2v(x1, x2, params, block_n=8))
    ref = jax.block_until_ready(greedy_seq_t2v_ref(x1, x2, params))

    assert out.shape == (N,), out.shape
    # Tolerance 1e-4: absorbs the few-ULP difference between the hardware tanh and the
    # exact 2*sigmoid(2x)-1 identity used in the kernel (flagged in the review),
    # accumulated over the W recurrence steps.
    assert jnp.allclose(out, ref, atol=1e-4, rtol=1e-4), (out, ref)
    print("KERNEL_OK")
</pallas_src>

<mosaic_0001>
module attributes {stable_mosaic.version = 11 : i64} {
  func.func @greedy_seq_t2v_kernel(%arg0: i32, %arg1: memref<8x8x8xf32, #tpu.memory_space<vmem>>, %arg2: memref<8x1xf32, #tpu.memory_space<vmem>>, %arg3: memref<40x128xf32, #tpu.memory_space<vmem>>, %arg4: memref<16x32xf32, #tpu.memory_space<vmem>>, %arg5: memref<7x128xf32, #tpu.memory_space<vmem>>, %arg6: memref<8x1xf32, #tpu.memory_space<vmem>>) attributes {dimension_semantics = [#tpu.dimension_semantics<parallel>], iteration_bounds = array<i64: 2>, scalar_prefetch = 0 : i64, scratch_operands = 0 : i64, tpu.core_type = #tpu.core_type<tc>, window_params = [{transform_indices = @transform_0, window_bounds = array<i64: 8, 8, 8>}, {transform_indices = @transform_1, window_bounds = array<i64: 8, 1>}, {pipeline_mode = #tpu.pipeline_mode<synchronous>, transform_indices = @transform_2, window_bounds = array<i64: 40, 128>}, {pipeline_mode = #tpu.pipeline_mode<synchronous>, transform_indices = @transform_3, window_bounds = array<i64: 16, 32>}, {pipeline_mode = #tpu.pipeline_mode<synchronous>, transform_indices = @transform_4, window_bounds = array<i64: 7, 128>}, {transform_indices = @transform_5, window_bounds = array<i64: 8, 1>}]} {
    %c0 = arith.constant 0 : index
    %c0_0 = arith.constant 0 : index
    %0 = vector.load %arg3[%c0, %c0_0] : memref<40x128xf32, #tpu.memory_space<vmem>>, vector<8x128xf32>
    %c8 = arith.constant 8 : index
    %c0_1 = arith.constant 0 : index
    %1 = vector.load %arg3[%c8, %c0_1] : memref<40x128xf32, #tpu.memory_space<vmem>>, vector<32x128xf32>
    %c0_2 = arith.constant 0 : index
    %c0_3 = arith.constant 0 : index
    %2 = vector.load %arg5[%c0_2, %c0_3] : memref<7x128xf32, #tpu.memory_space<vmem>>, vector<1x128xf32>
    %c0_4 = arith.constant 0 : index
    %c0_5 = arith.constant 0 : index
    %c0_6 = arith.constant 0 : index
    %3 = vector.load %arg1[%c0_4, %c0_5, %c0_6] : memref<8x8x8xf32, #tpu.memory_space<vmem>>, vector<8x8x8xf32>
    %4 = vector.shape_cast %3 : vector<8x8x8xf32> to vector<64x8xf32>
    %cst = arith.constant dense<0.000000e+00> : vector<64x128xf32>
    %5 = tpu.matmul %4, %0, %cst {dimension_numbers = #tpu.dot_dimension_numbers<[1], [0], [0], [1], [0, 0, 1, 1], [], []>} : vector<64x8xf32>, vector<8x128xf32>, vector<64x128xf32> -> vector<64x128xf32>
    %6 = vector.broadcast %2 : vector<1x128xf32> to vector<64x128xf32>
    %7 = arith.addf %5, %6 : vector<64x128xf32>
    %cst_7 = arith.constant 0.000000e+00 : f32
    %8 = vector.broadcast %cst_7 : f32 to vector<8x32xf32>
    %cst_8 = arith.constant 0.000000e+00 : f32
    %9 = vector.broadcast %cst_8 : f32 to vector<8x32xf32>
    %10 = vector.extract_strided_slice %7 {offsets = [0, 0], sizes = [8, 128], strides = [1, 1]} : vector<64x128xf32> to vector<8x128xf32>
    %cst_9 = arith.constant dense<0.000000e+00> : vector<8x128xf32>
    %11 = tpu.matmul %8, %1, %cst_9 {dimension_numbers = #tpu.dot_dimension_numbers<[1], [0], [0], [1], [0, 0, 1, 1], [], []>} : vector<8x32xf32>, vector<32x128xf32>, vector<8x128xf32> -> vector<8x128xf32>
    %12 = arith.addf %10, %11 : vector<8x128xf32>
    %13 = arith.negf %12 : vector<8x128xf32>
    %14 = math.exp %13 : vector<8x128xf32>
    %cst_10 = arith.constant 1.000000e+00 : f32
    %15 = vector.broadcast %cst_10 : f32 to vector<8x128xf32>
    %16 = arith.addf %15, %14 : vector<8x128xf32>
    %17 = arith.divf %15, %16 : vector<8x128xf32>
    %18 = vector.extract_strided_slice %17 {offsets = [0, 0], sizes = [8, 32], strides = [1, 1]} : vector<8x128xf32> to vector<8x32xf32>
    %19 = vector.extract_strided_slice %17 {offsets = [0, 32], sizes = [8, 32], strides = [1, 1]} : vector<8x128xf32> to vector<8x32xf32>
    %20 = vector.extract_strided_slice %17 {offsets = [0, 64], sizes = [8, 32], strides = [1, 1]} : vector<8x128xf32> to vector<8x32xf32>
    %cst_11 = arith.constant 2.000000e+00 : f32
    %21 = vector.broadcast %cst_11 : f32 to vector<8x32xf32>
    %22 = arith.mulf %21, %20 : vector<8x32xf32>
    %cst_12 = arith.constant 1.000000e+00 : f32
    %23 = vector.broadcast %cst_12 : f32 to vector<8x32xf32>
    %24 = arith.subf %22, %23 : vector<8x32xf32>
    %25 = vector.extract_strided_slice %17 {offsets = [0, 96], sizes = [8, 32], strides = [1, 1]} : vector<8x128xf32> to vector<8x32xf32>
    %26 = arith.mulf %19, %9 : vector<8x32xf32>
    %27 = arith.mulf %18, %24 : vector<8x32xf32>
    %28 = arith.addf %26, %27 : vector<8x32xf32>
    %29 = math.tanh %28 : vector<8x32xf32>
    %30 = arith.mulf %25, %29 : vector<8x32xf32>
    %31 = vector.extract_strided_slice %7 {offsets = [8, 0], sizes = [8, 128], strides = [1, 1]} : vector<64x128xf32> to vector<8x128xf32>
    %cst_13 = arith.constant dense<0.000000e+00> : vector<8x128xf32>
    %32 = tpu.matmul %30, %1, %cst_13 {dimension_numbers = #tpu.dot_dimension_numbers<[1], [0], [0], [1], [0, 0, 1, 1], [], []>} : vector<8x32xf32>, vector<32x128xf32>, vector<8x128xf32> -> vector<8x128xf32>
    %33 = arith.addf %31, %32 : vector<8x128xf32>
    %34 = arith.negf %33 : vector<8x128xf32>
    %35 = math.exp %34 : vector<8x128xf32>
    %cst_14 = arith.constant 1.000000e+00 : f32
    %36 = vector.broadcast %cst_14 : f32 to vector<8x128xf32>
    %37 = arith.addf %36, %35 : vector<8x128xf32>
    %38 = arith.divf %36, %37 : vector<8x128xf32>
    %39 = vector.extract_strided_slice %38 {offsets = [0, 0], sizes = [8, 32], strides = [1, 1]} : vector<8x128xf32> to vector<8x32xf32>
    %40 = vector.extract_strided_slice %38 {offsets = [0, 32], sizes = [8, 32], strides = [1, 1]} : vector<8x128xf32> to vector<8x32xf32>
    %41 = vector.extract_strided_slice %38 {offsets = [0, 64], sizes = [8, 32], strides = [1, 1]} : vector<8x128xf32> to vector<8x32xf32>
    %cst_15 = arith.constant 2.000000e+00 : f32
    %42 = vector.broadcast %cst_15 : f32 to vector<8x32xf32>
    %43 = arith.mulf %42, %41 : vector<8x32xf32>
    %cst_16 = arith.constant 1.000000e+00 : f32
    %44 = vector.broadcast %cst_16 : f32 to vector<8x32xf32>
    %45 = arith.subf %43, %44 : vector<8x32xf32>
    %46 = vector.extract_strided_slice %38 {offsets = [0, 96], sizes = [8, 32], strides = [1, 1]} : vector<8x128xf32> to vector<8x32xf32>
    %47 = arith.mulf %40, %28 : vector<8x32xf32>
    %48 = arith.mulf %39, %45 : vector<8x32xf32>
    %49 = arith.addf %47, %48 : vector<8x32xf32>
    %50 = math.tanh %49 : vector<8x32xf32>
    %51 = arith.mulf %46, %50 : vector<8x32xf32>
    %52 = vector.extract_strided_slice %7 {offsets = [16, 0], sizes = [8, 128], strides = [1, 1]} : vector<64x128xf32> to vector<8x128xf32>
    %cst_17 = arith.constant dense<0.000000e+00> : vector<8x128xf32>
    %53 = tpu.matmul %51, %1, %cst_17 {dimension_numbers = #tpu.dot_dimension_numbers<[1], [0], [0], [1], [0, 0, 1, 1], [], []>} : vector<8x32xf32>, vector<32x128xf32>, vector<8x128xf32> -> vector<8x128xf32>
    %54 = arith.addf %52, %53 : vector<8x128xf32>
    %55 = arith.negf %54 : vector<8x128xf32>
    %56 = math.exp %55 : vector<8x128xf32>
    %cst_18 = arith.constant 1.000000e+00 : f32
    %57 = vector.broadcast %cst_18 : f32 to vector<8x128xf32>
    %58 = arith.addf %57, %56 : vector<8x128xf32>
    %59 = arith.divf %57, %58 : vector<8x128xf32>
    %60 = vector.extract_strided_slice %59 {offsets = [0, 0], sizes = [8, 32], strides = [1, 1]} : vector<8x128xf32> to vector<8x32xf32>
    %61 = vector.extract_strided_slice %59 {offsets = [0, 32], sizes = [8, 32], strides = [1, 1]} : vector<8x128xf32> to vector<8x32xf32>
    %62 = vector.extract_strided_slice %59 {offsets = [0, 64], sizes = [8, 32], strides = [1, 1]} : vector<8x128xf32> to vector<8x32xf32>
    %cst_19 = arith.constant 2.000000e+00 : f32
    %63 = vector.broadcast %cst_19 : f32 to vector<8x32xf32>
    %64 = arith.mulf %63, %62 : vector<8x32xf32>
    %cst_20 = arith.constant 1.000000e+00 : f32
    %65 = vector.broadcast %cst_20 : f32 to vector<8x32xf32>
    %66 = arith.subf %64, %65 : vector<8x32xf32>
    %67 = vector.extract_strided_slice %59 {offsets = [0, 96], sizes = [8, 32], strides = [1, 1]} : vector<8x128xf32> to vector<8x32xf32>
    %68 = arith.mulf %61, %49 : vector<8x32xf32>
    %69 = arith.mulf %60, %66 : vector<8x32xf32>
    %70 = arith.addf %68, %69 : vector<8x32xf32>
    %71 = math.tanh %70 : vector<8x32xf32>
    %72 = arith.mulf %67, %71 : vector<8x32xf32>
    %73 = vector.extract_strided_slice %7 {offsets = [24, 0], sizes = [8, 128], strides = [1, 1]} : vector<64x128xf32> to vector<8x128xf32>
    %cst_21 = arith.constant dense<0.000000e+00> : vector<8x128xf32>
    %74 = tpu.matmul %72, %1, %cst_21 {dimension_numbers = #tpu.dot_dimension_numbers<[1], [0], [0], [1], [0, 0, 1, 1], [], []>} : vector<8x32xf32>, vector<32x128xf32>, vector<8x128xf32> -> vector<8x128xf32>
    %75 = arith.addf %73, %74 : vector<8x128xf32>
    %76 = arith.negf %75 : vector<8x128xf32>
    %77 = math.exp %76 : vector<8x128xf32>
    %cst_22 = arith.constant 1.000000e+00 : f32
    %78 = vector.broadcast %cst_22 : f32 to vector<8x128xf32>
    %79 = arith.addf %78, %77 : vector<8x128xf32>
    %80 = arith.divf %78, %79 : vector<8x128xf32>
    %81 = vector.extract_strided_slice %80 {offsets = [0, 0], sizes = [8, 32], strides = [1, 1]} : vector<8x128xf32> to vector<8x32xf32>
    %82 = vector.extract_strided_slice %80 {offsets = [0, 32], sizes = [8, 32], strides = [1, 1]} : vector<8x128xf32> to vector<8x32xf32>
    %83 = vector.extract_strided_slice %80 {offsets = [0, 64], sizes = [8, 32], strides = [1, 1]} : vector<8x128xf32> to vector<8x32xf32>
    %cst_23 = arith.constant 2.000000e+00 : f32
    %84 = vector.broadcast %cst_23 : f32 to vector<8x32xf32>
    %85 = arith.mulf %84, %83 : vector<8x32xf32>
    %cst_24 = arith.constant 1.000000e+00 : f32
    %86 = vector.broadcast %cst_24 : f32 to vector<8x32xf32>
    %87 = arith.subf %85, %86 : vector<8x32xf32>
    %88 = vector.extract_strided_slice %80 {offsets = [0, 96], sizes = [8, 32], strides = [1, 1]} : vector<8x128xf32> to vector<8x32xf32>
    %89 = arith.mulf %82, %70 : vector<8x32xf32>
    %90 = arith.mulf %81, %87 : vector<8x32xf32>
    %91 = arith.addf %89, %90 : vector<8x32xf32>
    %92 = math.tanh %91 : vector<8x32xf32>
    %93 = arith.mulf %88, %92 : vector<8x32xf32>
    %94 = vector.extract_strided_slice %7 {offsets = [32, 0], sizes = [8, 128], strides = [1, 1]} : vector<64x128xf32> to vector<8x128xf32>
    %cst_25 = arith.constant dense<0.000000e+00> : vector<8x128xf32>
    %95 = tpu.matmul %93, %1, %cst_25 {dimension_numbers = #tpu.dot_dimension_numbers<[1], [0], [0], [1], [0, 0, 1, 1], [], []>} : vector<8x32xf32>, vector<32x128xf32>, vector<8x128xf32> -> vector<8x128xf32>
    %96 = arith.addf %94, %95 : vector<8x128xf32>
    %97 = arith.negf %96 : vector<8x128xf32>
    %98 = math.exp %97 : vector<8x128xf32>
    %cst_26 = arith.constant 1.000000e+00 : f32
    %99 = vector.broadcast %cst_26 : f32 to vector<8x128xf32>
    %100 = arith.addf %99, %98 : vector<8x128xf32>
    %101 = arith.divf %99, %100 : vector<8x128xf32>
    %102 = vector.extract_strided_slice %101 {offsets = [0, 0], sizes = [8, 32], strides = [1, 1]} : vector<8x128xf32> to vector<8x32xf32>
    %103 = vector.extract_strided_slice %101 {offsets = [0, 32], sizes = [8, 32], strides = [1, 1]} : vector<8x128xf32> to vector<8x32xf32>
    %104 = vector.extract_strided_slice %101 {offsets = [0, 64], sizes = [8, 32], strides = [1, 1]} : vector<8x128xf32> to vector<8x32xf32>
    %cst_27 = arith.constant 2.000000e+00 : f32
    %105 = vector.broadcast %cst_27 : f32 to vector<8x32xf32>
    %106 = arith.mulf %105, %104 : vector<8x32xf32>
    %cst_28 = arith.constant 1.000000e+00 : f32
    %107 = vector.broadcast %cst_28 : f32 to vector<8x32xf32>
    %108 = arith.subf %106, %107 : vector<8x32xf32>
    %109 = vector.extract_strided_slice %101 {offsets = [0, 96], sizes = [8, 32], strides = [1, 1]} : vector<8x128xf32> to vector<8x32xf32>
    %110 = arith.mulf %103, %91 : vector<8x32xf32>
    %111 = arith.mulf %102, %108 : vector<8x32xf32>
    %112 = arith.addf %110, %111 : vector<8x32xf32>
    %113 = math.tanh %112 : vector<8x32xf32>
    %114 = arith.mulf %109, %113 : vector<8x32xf32>
    %115 = vector.extract_strided_slice %7 {offsets = [40, 0], sizes = [8, 128], strides = [1, 1]} : vector<64x128xf32> to vector<8x128xf32>
    %cst_29 = arith.constant dense<0.000000e+00> : vector<8x128xf32>
    %116 = tpu.matmul %114, %1, %cst_29 {dimension_numbers = #tpu.dot_dimension_numbers<[1], [0], [0], [1], [0, 0, 1, 1], [], []>} : vector<8x32xf32>, vector<32x128xf32>, vector<8x128xf32> -> vector<8x128xf32>
    %117 = arith.addf %115, %116 : vector<8x128xf32>
    %118 = arith.negf %117 : vector<8x128xf32>
    %119 = math.exp %118 : vector<8x128xf32>
    %cst_30 = arith.constant 1.000000e+00 : f32
    %120 = vector.broadcast %cst_30 : f32 to vector<8x128xf32>
    %121 = arith.addf %120, %119 : vector<8x128xf32>
    %122 = arith.divf %120, %121 : vector<8x128xf32>
    %123 = vector.extract_strided_slice %122 {offsets = [0, 0], sizes = [8, 32], strides = [1, 1]} : vector<8x128xf32> to vector<8x32xf32>
    %124 = vector.extract_strided_slice %122 {offsets = [0, 32], sizes = [8, 32], strides = [1, 1]} : vector<8x128xf32> to vector<8x32xf32>
    %125 = vector.extract_strided_slice %122 {offsets = [0, 64], sizes = [8, 32], strides = [1, 1]} : vector<8x128xf32> to vector<8x32xf32>
    %cst_31 = arith.constant 2.000000e+00 : f32
    %126 = vector.broadcast %cst_31 : f32 to vector<8x32xf32>
    %127 = arith.mulf %126, %125 : vector<8x32xf32>
    %cst_32 = arith.constant 1.000000e+00 : f32
    %128 = vector.broadcast %cst_32 : f32 to vector<8x32xf32>
    %129 = arith.subf %127, %128 : vector<8x32xf32>
    %130 = vector.extract_strided_slice %122 {offsets = [0, 96], sizes = [8, 32], strides = [1, 1]} : vector<8x128xf32> to vector<8x32xf32>
    %131 = arith.mulf %124, %112 : vector<8x32xf32>
    %132 = arith.mulf %123, %129 : vector<8x32xf32>
    %133 = arith.addf %131, %132 : vector<8x32xf32>
    %134 = math.tanh %133 : vector<8x32xf32>
    %135 = arith.mulf %130, %134 : vector<8x32xf32>
    %136 = vector.extract_strided_slice %7 {offsets = [48, 0], sizes = [8, 128], strides = [1, 1]} : vector<64x128xf32> to vector<8x128xf32>
    %cst_33 = arith.constant dense<0.000000e+00> : vector<8x128xf32>
    %137 = tpu.matmul %135, %1, %cst_33 {dimension_numbers = #tpu.dot_dimension_numbers<[1], [0], [0], [1], [0, 0, 1, 1], [], []>} : vector<8x32xf32>, vector<32x128xf32>, vector<8x128xf32> -> vector<8x128xf32>
    %138 = arith.addf %136, %137 : vector<8x128xf32>
    %139 = arith.negf %138 : vector<8x128xf32>
    %140 = math.exp %139 : vector<8x128xf32>
    %cst_34 = arith.constant 1.000000e+00 : f32
    %141 = vector.broadcast %cst_34 : f32 to vector<8x128xf32>
    %142 = arith.addf %141, %140 : vector<8x128xf32>
    %143 = arith.divf %141, %142 : vector<8x128xf32>
    %144 = vector.extract_strided_slice %143 {offsets = [0, 0], sizes = [8, 32], strides = [1, 1]} : vector<8x128xf32> to vector<8x32xf32>
    %145 = vector.extract_strided_slice %143 {offsets = [0, 32], sizes = [8, 32], strides = [1, 1]} : vector<8x128xf32> to vector<8x32xf32>
    %146 = vector.extract_strided_slice %143 {offsets = [0, 64], sizes = [8, 32], strides = [1, 1]} : vector<8x128xf32> to vector<8x32xf32>
    %cst_35 = arith.constant 2.000000e+00 : f32
    %147 = vector.broadcast %cst_35 : f32 to vector<8x32xf32>
    %148 = arith.mulf %147, %146 : vector<8x32xf32>
    %cst_36 = arith.constant 1.000000e+00 : f32
    %149 = vector.broadcast %cst_36 : f32 to vector<8x32xf32>
    %150 = arith.subf %148, %149 : vector<8x32xf32>
    %151 = vector.extract_strided_slice %143 {offsets = [0, 96], sizes = [8, 32], strides = [1, 1]} : vector<8x128xf32> to vector<8x32xf32>
    %152 = arith.mulf %145, %133 : vector<8x32xf32>
    %153 = arith.mulf %144, %150 : vector<8x32xf32>
    %154 = arith.addf %152, %153 : vector<8x32xf32>
    %155 = math.tanh %154 : vector<8x32xf32>
    %156 = arith.mulf %151, %155 : vector<8x32xf32>
    %157 = vector.extract_strided_slice %7 {offsets = [56, 0], sizes = [8, 128], strides = [1, 1]} : vector<64x128xf32> to vector<8x128xf32>
    %cst_37 = arith.constant dense<0.000000e+00> : vector<8x128xf32>
    %158 = tpu.matmul %156, %1, %cst_37 {dimension_numbers = #tpu.dot_dimension_numbers<[1], [0], [0], [1], [0, 0, 1, 1], [], []>} : vector<8x32xf32>, vector<32x128xf32>, vector<8x128xf32> -> vector<8x128xf32>
    %159 = arith.addf %157, %158 : vector<8x128xf32>
    %160 = arith.negf %159 : vector<8x128xf32>
    %161 = math.exp %160 : vector<8x128xf32>
    %cst_38 = arith.constant 1.000000e+00 : f32
    %162 = vector.broadcast %cst_38 : f32 to vector<8x128xf32>
    %163 = arith.addf %162, %161 : vector<8x128xf32>
    %164 = arith.divf %162, %163 : vector<8x128xf32>
    %165 = vector.extract_strided_slice %164 {offsets = [0, 0], sizes = [8, 32], strides = [1, 1]} : vector<8x128xf32> to vector<8x32xf32>
    %166 = vector.extract_strided_slice %164 {offsets = [0, 32], sizes = [8, 32], strides = [1, 1]} : vector<8x128xf32> to vector<8x32xf32>
    %167 = vector.extract_strided_slice %164 {offsets = [0, 64], sizes = [8, 32], strides = [1, 1]} : vector<8x128xf32> to vector<8x32xf32>
    %cst_39 = arith.constant 2.000000e+00 : f32
    %168 = vector.broadcast %cst_39 : f32 to vector<8x32xf32>
    %169 = arith.mulf %168, %167 : vector<8x32xf32>
    %cst_40 = arith.constant 1.000000e+00 : f32
    %170 = vector.broadcast %cst_40 : f32 to vector<8x32xf32>
    %171 = arith.subf %169, %170 : vector<8x32xf32>
    %172 = vector.extract_strided_slice %164 {offsets = [0, 96], sizes = [8, 32], strides = [1, 1]} : vector<8x128xf32> to vector<8x32xf32>
    %173 = arith.mulf %166, %154 : vector<8x32xf32>
    %174 = arith.mulf %165, %171 : vector<8x32xf32>
    %175 = arith.addf %173, %174 : vector<8x32xf32>
    %176 = math.tanh %175 : vector<8x32xf32>
    %177 = arith.mulf %172, %176 : vector<8x32xf32>
    %c0_41 = arith.constant 0 : index
    %c0_42 = arith.constant 0 : index
    %178 = vector.load %arg2[%c0_41, %c0_42] : memref<8x1xf32, #tpu.memory_space<vmem>>, vector<8x1xf32>
    %c1 = arith.constant 1 : index
    %c0_43 = arith.constant 0 : index
    %179 = vector.load %arg5[%c1, %c0_43] : memref<7x128xf32, #tpu.memory_space<vmem>>, vector<1x16xf32>
    %180 = vector.broadcast %178 : vector<8x1xf32> to vector<8x16xf32>
    %181 = vector.broadcast %179 : vector<1x16xf32> to vector<8x16xf32>
    %182 = arith.mulf %180, %181 : vector<8x16xf32>
    %c2 = arith.constant 2 : index
    %c0_44 = arith.constant 0 : index
    %183 = vector.load %arg5[%c2, %c0_44] : memref<7x128xf32, #tpu.memory_space<vmem>>, vector<1x16xf32>
    %184 = vector.broadcast %183 : vector<1x16xf32> to vector<8x16xf32>
    %185 = arith.addf %182, %184 : vector<8x16xf32>
    %186 = tpu.iota {dimensions = array<i32: 1>} : vector<8x16xi32>
    %c8_i32 = arith.constant 8 : i32
    %187 = vector.broadcast %c8_i32 : i32 to vector<8x16xi32>
    %188 = arith.cmpi slt, %186, %187 : vector<8x16xi32>
    %189 = math.sin %185 : vector<8x16xf32>
    %190 = arith.select %188, %185, %189 : vector<8x16xi1>, vector<8x16xf32>
    %c0_45 = arith.constant 0 : index
    %c0_46 = arith.constant 0 : index
    %191 = vector.load %arg4[%c0_45, %c0_46] : memref<16x32xf32, #tpu.memory_space<vmem>>, vector<16x32xf32>
    %cst_47 = arith.constant dense<0.000000e+00> : vector<8x32xf32>
    %192 = tpu.matmul %190, %191, %cst_47 {dimension_numbers = #tpu.dot_dimension_numbers<[1], [0], [0], [1], [0, 0, 1, 1], [], []>} : vector<8x16xf32>, vector<16x32xf32>, vector<8x32xf32> -> vector<8x32xf32>
    %c3 = arith.constant 3 : index
    %c0_48 = arith.constant 0 : index
    %193 = vector.load %arg5[%c3, %c0_48] : memref<7x128xf32, #tpu.memory_space<vmem>>, vector<1x32xf32>
    %194 = vector.broadcast %193 : vector<1x32xf32> to vector<8x32xf32>
    %195 = arith.addf %192, %194 : vector<8x32xf32>
    %c4 = arith.constant 4 : index
    %c0_49 = arith.constant 0 : index
    %196 = vector.load %arg5[%c4, %c0_49] : memref<7x128xf32, #tpu.memory_space<vmem>>, vector<1x32xf32>
    %197 = vector.broadcast %196 : vector<1x32xf32> to vector<8x32xf32>
    %198 = arith.mulf %177, %197 : vector<8x32xf32>
    %c5 = arith.constant 5 : index
    %c0_50 = arith.constant 0 : index
    %199 = vector.load %arg5[%c5, %c0_50] : memref<7x128xf32, #tpu.memory_space<vmem>>, vector<1x32xf32>
    %200 = vector.broadcast %199 : vector<1x32xf32> to vector<8x32xf32>
    %201 = arith.mulf %195, %200 : vector<8x32xf32>
    %202 = arith.addf %198, %201 : vector<8x32xf32>
    %cst_51 = arith.constant dense<0.000000e+00> : vector<8xf32>
    %203 = vector.multi_reduction <add>, %202, %cst_51 [1] : vector<8x32xf32> to vector<8xf32>
    %204 = vector.shape_cast %203 : vector<8xf32> to vector<8x1xf32>
    %c6 = arith.constant 6 : index
    %c0_52 = arith.constant 0 : index
    %205 = vector.load %arg5[%c6, %c0_52] : memref<7x128xf32, #tpu.memory_space<vmem>>, vector<1x1xf32>
    %206 = vector.broadcast %205 : vector<1x1xf32> to vector<8x1xf32>
    %207 = arith.addf %204, %206 : vector<8x1xf32>
    %c0_53 = arith.constant 0 : index
    %c0_54 = arith.constant 0 : index
    %208 = vector.load %arg6[%c0_53, %c0_54] : memref<8x1xf32, #tpu.memory_space<vmem>>, vector<8x1xf32>
    tpu.vector_store %arg6[%c0_53, %c0_54], %207 {strides = array<i32>} : memref<8x1xf32, #tpu.memory_space<vmem>>, vector<8x1xf32>,
    return
  }
  func.func @transform_0(%arg0: i32) -> (i32, i32, i32) {
    %c0_i32 = arith.constant 0 : i32
    %c0_i32_0 = arith.constant 0 : i32
    %c0_i32_1 = arith.constant 0 : i32
    return %c0_i32, %arg0, %c0_i32_0 : i32, i32, i32
  }
  func.func @transform_1(%arg0: i32) -> (i32, i32) {
    %c0_i32 = arith.constant 0 : i32
    %c0_i32_0 = arith.constant 0 : i32
    return %arg0, %c0_i32 : i32, i32
  }
  func.func @transform_2(%arg0: i32) -> (i32, i32) {
    %c0_i32 = arith.constant 0 : i32
    %c0_i32_0 = arith.constant 0 : i32
    %c0_i32_1 = arith.constant 0 : i32
    return %c0_i32, %c0_i32_0 : i32, i32
  }
  func.func @transform_3(%arg0: i32) -> (i32, i32) {
    %c0_i32 = arith.constant 0 : i32
    %c0_i32_0 = arith.constant 0 : i32
    %c0_i32_1 = arith.constant 0 : i32
    return %c0_i32, %c0_i32_0 : i32, i32
  }
  func.func @transform_4(%arg0: i32) -> (i32, i32) {
    %c0_i32 = arith.constant 0 : i32
    %c0_i32_0 = arith.constant 0 : i32
    %c0_i32_1 = arith.constant 0 : i32
    return %c0_i32, %c0_i32_0 : i32, i32
  }
  func.func @transform_5(%arg0: i32) -> (i32, i32) {
    %c0_i32 = arith.constant 0 : i32
    %c0_i32_0 = arith.constant 0 : i32
    return %arg0, %c0_i32 : i32, i32
  }
}

</mosaic_0001>

<llo_original>
// kernel: tpu_custom_call.1
$region0: #{tpu_custom_call.1}
  #allocation0 [shape = 'u32[]', space=smem, size = 0x4, offset = 0x4, fixed_abs, tag = 'smem constant byte address 0x4 - core index']
  #allocation1 [shape = 'u32[72,128]{1,0:T(1,128)}', space=vmem, size = 0x9000, scoped, tag = 'internal scratch']
  %s0 = inlined_call_operand.vmem [shape: f32[8,16,8], index: 0, kind: input, shape index: {}]
  %s1 = inlined_call_operand.vmem [shape: f32[16,1], index: 1, kind: input, shape index: {}]
  %s2 = inlined_call_operand.vmem [shape: f32[40,128], index: 2, kind: input, shape index: {}]
  %s3 = inlined_call_operand.vmem [shape: f32[16,32], index: 3, kind: input, shape index: {}]
  %s4 = inlined_call_operand.vmem [shape: f32[7,128], index: 4, kind: input, shape index: {}]
  %s5 = inlined_call_operand.vmem [shape: f32[16,1], index: 5, kind: output, shape index: {}]
  %s6 = sld [smem:[#allocation0]]
  $region91: #{tpu_custom_call.1} parent=0
    _
  %s8 = ssub.s32 1, %s6
  %s9 = scalar_select 0, %s8, %s6
  $region1: #{tpu_custom_call.1} parent=0
    #allocation2 [shape = 'u8[65536]{0}', space=vmem, size = 0x10000, scoped, tag = 'input window, operand 0']
    loop: start=0, step=1, limit=4
    $region2: #{tpu_custom_call.1} parent=1 // loop_pre_header
      _
    $region3: #{tpu_custom_call.1} parent=1 // loop_header
      %s11 = sphi 0, %s15
      %p12 = scmp.ge.s32.totalorder %s11, 4
      %s21 = sphi 0, %s23
      %s24 = sphi 0, %s21
      %s25 = sphi 0, %s24
      %s41 = sphi 0, %s25
      %s47 = sphi 0, %s49
      %s50 = sphi 0, %s47
      %s51 = sphi 0, %s50
      %s67 = sphi 0, %s51
      %s71 = sphi 0, %s71
      %s73 = sphi 0, %s71
      %s74 = sphi 0, %s73
      %s88 = sphi 0, %s74
      %s92 = sphi 0, %s92
      %s94 = sphi 0, %s92
      %s95 = sphi 0, %s94
      %s109 = sphi 0, %s95
      %s113 = sphi 0, %s113
      %s115 = sphi 0, %s113
      %s116 = sphi 0, %s115
      %s130 = sphi 0, %s116
      %s136 = sphi 0, %s138
      %s139 = sphi 0, %s136
      %s140 = sphi 0, %s139
      %s156 = sphi 0, %s140
    $region4: #{tpu_custom_call.1} parent=1 // loop_header_branch
      %14 = sbr.rel (%p12) target = $region8
    $region5: #{tpu_custom_call.1} parent=1 // loop_body
      %s16 = ssub.s32 %s11, 1
      %s17 = ssub.s32 %s11, 2
      %s18 = sadd.s32 %s11, 1
      %s19 = ssub.s32 %s11, %s18
      %p20 = scmp.eq.s32.totalorder %s19, 0
      %s22 = sadd.s32 %s21, 1
      %s23 = scalar_select %p20, %s21, %s22
      %p26 = pneg %p20
      %p27 = scmp.eq.s32.totalorder %s11, 1
      %p28 = por %p26, %p27
      %p29 = scmp.ne.s32.totalorder %s21, %s24
      %p30 = scmp.eq.s32.totalorder %s11, 0
      %p31 = por %p29, %p30
      %p32 = scmp.ne.s32.totalorder %s21, %s24
      %p33 = scmp.eq.s32.totalorder %s16, 1
      %p34 = por %p32, %p33
      %p35 = scmp.ne.s32.totalorder %s24, %s25
      %p36 = scmp.eq.s32.totalorder %s16, 0
      %p37 = por %p35, %p36
      %p38 = scmp.ne.s32.totalorder %s24, %s25
      %p39 = scmp.eq.s32.totalorder %s17, 1
      %p40 = por %p38, %p39
      %p42 = scmp.ne.s32.totalorder %s25, %s41
      %p43 = scmp.eq.s32.totalorder %s17, 0
      %p44 = por %p42, %p43
      %s45 = ssub.s32 %s11, %s18
      %p46 = scmp.eq.s32.totalorder %s45, 0
      %s48 = sadd.s32 %s47, 1
      %s49 = scalar_select %p46, %s47, %s48
      %p52 = pneg %p46
      %p53 = scmp.eq.s32.totalorder %s11, 1
      %p54 = por %p52, %p53
      %p55 = scmp.ne.s32.totalorder %s47, %s50
      %p56 = scmp.eq.s32.totalorder %s11, 0
      %p57 = por %p55, %p56
      %p58 = scmp.ne.s32.totalorder %s47, %s50
      %p59 = scmp.eq.s32.totalorder %s16, 1
      %p60 = por %p58, %p59
      %p61 = scmp.ne.s32.totalorder %s50, %s51
      %p62 = scmp.eq.s32.totalorder %s16, 0
      %p63 = por %p61, %p62
      %p64 = scmp.ne.s32.totalorder %s50, %s51
      %p65 = scmp.eq.s32.totalorder %s17, 1
      %p66 = por %p64, %p65
      %p68 = scmp.ne.s32.totalorder %s51, %s67
      %p69 = scmp.eq.s32.totalorder %s17, 0
      %p70 = por %p68, %p69
      %s72 = sadd.s32 %s71, 1
      %p75 = scmp.eq.s32.totalorder %s11, 1
      %p76 = scmp.ne.s32.totalorder %s71, %s73
      %p77 = scmp.eq.s32.totalorder %s11, 0
      %p78 = por %p76, %p77
      %p79 = scmp.ne.s32.totalorder %s71, %s73
      %p80 = scmp.eq.s32.totalorder %s16, 1
      %p81 = por %p79, %p80
      %p82 = scmp.ne.s32.totalorder %s73, %s74
      %p83 = scmp.eq.s32.totalorder %s16, 0
      %p84 = por %p82, %p83
      %p85 = scmp.ne.s32.totalorder %s73, %s74
      %p86 = scmp.eq.s32.totalorder %s17, 1
      %p87 = por %p85, %p86
      %p89 = scmp.ne.s32.totalorder %s74, %s88
      %p90 = scmp.eq.s32.totalorder %s17, 0
      %p91 = por %p89, %p90
      %s93 = sadd.s32 %s92, 1
      %p96 = scmp.eq.s32.totalorder %s11, 1
      %p97 = scmp.ne.s32.totalorder %s92, %s94
      %p98 = scmp.eq.s32.totalorder %s11, 0
      %p99 = por %p97, %p98
      %p100 = scmp.ne.s32.totalorder %s92, %s94
      %p101 = scmp.eq.s32.totalorder %s16, 1
      %p102 = por %p100, %p101
      %p103 = scmp.ne.s32.totalorder %s94, %s95
      %p104 = scmp.eq.s32.totalorder %s16, 0
      %p105 = por %p103, %p104
      %p106 = scmp.ne.s32.totalorder %s94, %s95
      %p107 = scmp.eq.s32.totalorder %s17, 1
      %p108 = por %p106, %p107
      %p110 = scmp.ne.s32.totalorder %s95, %s109
      %p111 = scmp.eq.s32.totalorder %s17, 0
      %p112 = por %p110, %p111
      %s114 = sadd.s32 %s113, 1
      %p117 = scmp.eq.s32.totalorder %s11, 1
      %p118 = scmp.ne.s32.totalorder %s113, %s115
      %p119 = scmp.eq.s32.totalorder %s11, 0
      %p120 = por %p118, %p119
      %p121 = scmp.ne.s32.totalorder %s113, %s115
      %p122 = scmp.eq.s32.totalorder %s16, 1
      %p123 = por %p121, %p122
      %p124 = scmp.ne.s32.totalorder %s115, %s116
      %p125 = scmp.eq.s32.totalorder %s16, 0
      %p126 = por %p124, %p125
      %p127 = scmp.ne.s32.totalorder %s115, %s116
      %p128 = scmp.eq.s32.totalorder %s17, 1
      %p129 = por %p127, %p128
      %p131 = scmp.ne.s32.totalorder %s116, %s130
      %p132 = scmp.eq.s32.totalorder %s17, 0
      %p133 = por %p131, %p132
      %s134 = ssub.s32 %s11, %s18
      %p135 = scmp.eq.s32.totalorder %s134, 0
      %s137 = sadd.s32 %s136, 1
      %s138 = scalar_select %p135, %s136, %s137
      %p141 = pneg %p135
      %p142 = scmp.eq.s32.totalorder %s11, 1
      %p143 = por %p141, %p142
      %p144 = scmp.ne.s32.totalorder %s136, %s139
      %p145 = scmp.eq.s32.totalorder %s11, 0
      %p146 = por %p144, %p145
      %p147 = scmp.ne.s32.totalorder %s136, %s139
      %p148 = scmp.eq.s32.totalorder %s16, 1
      %p149 = por %p147, %p148
      %p150 = scmp.ne.s32.totalorder %s139, %s140
      %p151 = scmp.eq.s32.totalorder %s16, 0
      %p152 = por %p150, %p151
      %p153 = scmp.ne.s32.totalorder %s139, %s140
      %p154 = scmp.eq.s32.totalorder %s17, 1
      %p155 = por %p153, %p154
      %p157 = scmp.ne.s32.totalorder %s140, %s156
      %p158 = scmp.eq.s32.totalorder %s17, 0
      %p159 = por %p157, %p158
      %p160 = scmp.le.s32.totalorder 1, %s11
      %p161 = scmp.lt.s32.totalorder %s11, 3
      %p162 = pnand %p160, %p161
      %p163 = pneg %p162
      // Predicated region
      $region9: #{tpu_custom_call.1} parent=5 // pred_check
        _
      $region10: #{tpu_custom_call.1} parent=5 // pred_check_branch
        %165 = sbr.rel (%p162) target = $region12
      $region11: #{tpu_custom_call.1} parent=5 // pred_region
        %s166 = ssub.s32 %s11, 1
        // Predicated region
        $region13: #{tpu_custom_call.1} parent=11 // pred_check
          %p167 = pneg %p84
        $region14: #{tpu_custom_call.1} parent=11 // pred_check_branch
          %169 = sbr.rel (%p167) target = $region16
        $region15: #{tpu_custom_call.1} parent=11 // pred_region
          _
        $region16: #{tpu_custom_call.1} parent=11 // pred_fallthru
          _
        // Predicated region
        $region17: #{tpu_custom_call.1} parent=11 // pred_check
          %p170 = pneg %p105
        $region18: #{tpu_custom_call.1} parent=11 // pred_check_branch
          %172 = sbr.rel (%p170) target = $region20
        $region19: #{tpu_custom_call.1} parent=11 // pred_region
          _
        $region20: #{tpu_custom_call.1} parent=11 // pred_fallthru
          _
        // Predicated region
        $region21: #{tpu_custom_call.1} parent=11 // pred_check
          %p173 = pneg %p126
        $region22: #{tpu_custom_call.1} parent=11 // pred_check_branch
          %175 = sbr.rel (%p173) target = $region24
        $region23: #{tpu_custom_call.1} parent=11 // pred_region
          _
        $region24: #{tpu_custom_call.1} parent=11 // pred_fallthru
          _
      $region12: #{tpu_custom_call.1} parent=5 // pred_fallthru
        _
      %p176 = scmp.lt.s32.totalorder %s11, 2
      // Predicated region
      $region25: #{tpu_custom_call.1} parent=5 // pred_check
        %p177 = pneg %p176
      $region26: #{tpu_custom_call.1} parent=5 // pred_check_branch
        %179 = sbr.rel (%p177) target = $region28
      $region27: #{tpu_custom_call.1} parent=5 // pred_region
        // Predicated region
        $region29: #{tpu_custom_call.1} parent=27 // pred_check
          %p180 = pneg %p31
        $region30: #{tpu_custom_call.1} parent=27 // pred_check_branch
          %182 = sbr.rel (%p180) target = $region32
        $region31: #{tpu_custom_call.1} parent=27 // pred_region
          %s183 = sand.u32 %s21, 1
          %s184 = sand.u32 %s21, 1
          %s185 = smul.addr %s184, 64
          %s186 = scalar_lea.vmem [#allocation2], %s185
          %s187 = smul.addr %s11, 8
          %s188 = scalar_lea.vmem %s0, %s187
          // Predicated region
          $region33: #{tpu_custom_call.1} parent=31 // pred_check
            _
          $region34: #{tpu_custom_call.1} parent=31 // pred_check_branch
            %190 = sbr.rel (0) target = $region36
          $region35: #{tpu_custom_call.1} parent=31 // pred_region
            // Predicated region
            $region37: #{tpu_custom_call.1} parent=35 // pred_check
              _
            $region38: #{tpu_custom_call.1} parent=35 // pred_check_branch
              %192 = sbr.rel (0) target = $region40
            $region39: #{tpu_custom_call.1} parent=35 // pred_region
              // Predicated region
              $region52: #{tpu_custom_call.1} parent=39 // pred_check
                _
              $region53: #{tpu_custom_call.1} parent=39 // pred_check_branch
                %222 = sbr.rel (0) target = $region55
              $region54: #{tpu_custom_call.1} parent=39 // pred_region
                loop: start=0, step=1, limit=1
                $region56: #{tpu_custom_call.1} parent=54 // loop_pre_header
                  _
                $region57: #{tpu_custom_call.1} parent=54 // loop_header
                  %s224 = sphi 0, %s228
                  %p225 = scmp.ge.s32.totalorder %s224, 1
                  %s229 = sphi %s188, %s188
                  %s230 = sphi %s186, %s186
                $region58: #{tpu_custom_call.1} parent=54 // loop_header_branch
                  %227 = sbr.rel (%p225) target = $region62
                $region59: #{tpu_custom_call.1} parent=54 // loop_body
                  %v231 = vld [vmem:[%s229] sm:$0xff]
                  %232 = vst [vmem:[%s230] sm:$0xff] %v231
                  %v233 = vld [vmem:[%s229 + $0x10] sm:$0xff]
                  %234 = vst [vmem:[%s230 + $0x8] sm:$0xff] %v233
                  %v235 = vld [vmem:[%s229 + $0x20] sm:$0xff]
                  %236 = vst [vmem:[%s230 + $0x10] sm:$0xff] %v235
                  %v237 = vld [vmem:[%s229 + $0x30] sm:$0xff]
                  %238 = vst [vmem:[%s230 + $0x18] sm:$0xff] %v237
                  %v239 = vld [vmem:[%s229 + $0x40] sm:$0xff]
                  %240 = vst [vmem:[%s230 + $0x20] sm:$0xff] %v239
                  %v241 = vld [vmem:[%s229 + $0x50] sm:$0xff]
                  %242 = vst [vmem:[%s230 + $0x28] sm:$0xff] %v241
                  %v243 = vld [vmem:[%s229 + $0x60] sm:$0xff]
                  %244 = vst [vmem:[%s230 + $0x30] sm:$0xff] %v243
                  %v245 = vld [vmem:[%s229 + $0x70] sm:$0xff]
                  %246 = vst [vmem:[%s230 + $0x38] sm:$0xff] %v245
                $region60: #{tpu_custom_call.1} parent=54 // loop_footer
                  %s228 = sadd.s32 1, %s224
                $region61: #{tpu_custom_call.1} parent=54 // loop_footer_branch
                  %223 = sbr.rel target = $region57
                $region62: #{tpu_custom_call.1} parent=54 // loop_exit
                  _
              $region55: #{tpu_custom_call.1} parent=39 // pred_fallthru
                _
              // Predicated region
              $region63: #{tpu_custom_call.1} parent=39 // pred_check
                _
              $region64: #{tpu_custom_call.1} parent=39 // pred_check_branch
                %248 = sbr.rel target = $region66
              $region65: #{tpu_custom_call.1} parent=39 // pred_region
                _
              $region66: #{tpu_custom_call.1} parent=39 // pred_fallthru
                _
            $region40: #{tpu_custom_call.1} parent=35 // pred_fallthru
              _
            // Predicated region
            $region41: #{tpu_custom_call.1} parent=35 // pred_check
              _
            $region42: #{tpu_custom_call.1} parent=35 // pred_check_branch
              %194 = sbr.rel target = $region44
            $region43: #{tpu_custom_call.1} parent=35 // pred_region
              %s196 = ssub.s32 256, 1
              loop: start=0, step=1, limit=1
              $region45: #{tpu_custom_call.1} parent=43 // loop_pre_header
                _
              $region46: #{tpu_custom_call.1} parent=43 // loop_header
                %s198 = sphi 0, %s202
                %p199 = scmp.ge.s32.totalorder %s198, 1
                %s203 = sphi %s188, %s188
                %s204 = sphi %s186, %s186
              $region47: #{tpu_custom_call.1} parent=43 // loop_header_branch
                %201 = sbr.rel (%p199) target = $region51
              $region48: #{tpu_custom_call.1} parent=43 // loop_body
                %v205 = vld [vmem:[%s203] sm:%s196]
                %206 = vst [vmem:[%s204] sm:%s196] %v205
                %v207 = vld [vmem:[%s203 + $0x10] sm:%s196]
                %208 = vst [vmem:[%s204 + $0x8] sm:%s196] %v207
                %v209 = vld [vmem:[%s203 + $0x20] sm:%s196]
                %210 = vst [vmem:[%s204 + $0x10] sm:%s196] %v209
                %v211 = vld [vmem:[%s203 + $0x30] sm:%s196]
                %212 = vst [vmem:[%s204 + $0x18] sm:%s196] %v211
                %v213 = vld [vmem:[%s203 + $0x40] sm:%s196]
                %214 = vst [vmem:[%s204 + $0x20] sm:%s196] %v213
                %v215 = vld [vmem:[%s203 + $0x50] sm:%s196]
                %216 = vst [vmem:[%s204 + $0x28] sm:%s196] %v215
                %v217 = vld [vmem:[%s203 + $0x60] sm:%s196]
                %218 = vst [vmem:[%s204 + $0x30] sm:%s196] %v217
                %v219 = vld [vmem:[%s203 + $0x70] sm:%s196]
                %220 = vst [vmem:[%s204 + $0x38] sm:%s196] %v219
              $region49: #{tpu_custom_call.1} parent=43 // loop_footer
                %s202 = sadd.s32 1, %s198
              $region50: #{tpu_custom_call.1} parent=43 // loop_footer_branch
                %197 = sbr.rel target = $region46
              $region51: #{tpu_custom_call.1} parent=43 // loop_exit
                _
            $region44: #{tpu_custom_call.1} parent=35 // pred_fallthru
              _
          $region36: #{tpu_custom_call.1} parent=31 // pred_fallthru
            _
          %249 = vnop
        $region32: #{tpu_custom_call.1} parent=27 // pred_fallthru
          _
        // Predicated region
        $region67: #{tpu_custom_call.1} parent=27 // pred_check
          %p250 = pneg %p57
        $region68: #{tpu_custom_call.1} parent=27 // pred_check_branch
          %252 = sbr.rel (%p250) target = $region70
        $region69: #{tpu_custom_call.1} parent=27 // pred_region
          %p253 = scmp.lt.s32.totalorder %s11, 1
          %s254 = scalar_select %p253, %s11, 1
          %s255 = smul.addr %s254, 8
          %s256 = scalar_lea.vmem %s1, %s255
        $region70: #{tpu_custom_call.1} parent=27 // pred_fallthru
          _
      $region28: #{tpu_custom_call.1} parent=5 // pred_fallthru
        _
      %p257 = scmp.le.s32.totalorder 1, %s11
      %p258 = scmp.lt.s32.totalorder %s11, 3
      %p259 = pnand %p257, %p258
      %p260 = pneg %p259
      // Predicated region
      $region71: #{tpu_custom_call.1} parent=5 // pred_check
        _
      $region72: #{tpu_custom_call.1} parent=5 // pred_check_branch
        %262 = sbr.rel (%p259) target = $region74
      $region73: #{tpu_custom_call.1} parent=5 // pred_region
        %s263 = ssub.s32 %s11, 1
        %s264 = sand.u32 %s24, 1
        %s265 = sand.u32 %s24, 1
        %s266 = smul.addr %s265, 64
        %s267 = scalar_lea.vmem [#allocation2], %s266
        // Predicated region
        $region75: #{tpu_custom_call.1} parent=73 // pred_check
          %p268 = pneg %p37
        $region76: #{tpu_custom_call.1} parent=73 // pred_check_branch
          %270 = sbr.rel (%p268) target = $region78
        $region77: #{tpu_custom_call.1} parent=73 // pred_region
          _
        $region78: #{tpu_custom_call.1} parent=73 // pred_fallthru
          _
        %s271 = sand.u32 %s24, 1
        %s272 = sand.u32 %s24, 1
        %s273 = smul.addr %s272, 64
        %s274 = scalar_lea.vmem [#allocation2], %s273
        %p275 = pneg %p37
        %p276 = pneg %p34
        %p277 = scmp.lt.s32.totalorder %s16, 1
        %s278 = scalar_select %p277, %s16, 1
        %s279 = smul.addr %s278, 8
        %s280 = scalar_lea.vmem %s1, %s279
        %p281 = pneg %p63
        %p282 = pneg %p60
        %p283 = pneg %p84
        %p284 = pneg %p81
        %p285 = pneg %p105
        %p286 = pneg %p102
        %p287 = pneg %p126
        %p288 = pneg %p123
        %p289 = pneg %p152
        %p290 = pneg %p149
        %p291 = scmp.lt.s32.totalorder %s16, 1
        %s292 = scalar_select %p291, %s16, 1
        %s293 = smul.addr %s292, 8
        %s294 = scalar_lea.vmem %s5, %s293
        %p295 = scmp.lt.s32.totalorder %s16, 1
        %s296 = scalar_select %p295, %s16, 1
        %s297 = smul.addr %s296, 8
        %s298 = scalar_lea.vmem %s1, %s297
        %p299 = scmp.lt.s32.totalorder %s16, 1
        %s300 = scalar_select %p299, %s16, 1
        %s301 = smul.addr %s300, 8
        %s302 = scalar_lea.vmem %s5, %s301
        %v303 = vld [vmem:[%s2] sm:$0xff]
        %v304 = vld [vmem:[%s2 + $0x8] sm:$0xff]
        %v305 = vld [vmem:[%s2 + $0x10] sm:$0xff]
        %v306 = vld [vmem:[%s2 + $0x18] sm:$0xff]
        %v307 = vld [vmem:[%s2 + $0x20] sm:$0xff]
        %v308 = vld [vmem:[%s4] sm:$0x1]
        %v309 = vld [vmem:[%s267] sm:$0xff]
        %v310 = vld [vmem:[%s267 + $0x8] sm:$0xff]
        %v311 = vld [vmem:[%s267 + $0x10] sm:$0xff]
        %v312 = vld [vmem:[%s267 + $0x18] sm:$0xff]
        %v313 = vld [vmem:[%s267 + $0x20] sm:$0xff]
        %v314 = vld [vmem:[%s267 + $0x28] sm:$0xff]
        %v315 = vld [vmem:[%s267 + $0x30] sm:$0xff]
        %v316 = vld [vmem:[%s267 + $0x38] sm:$0xff]
        %v317 = vperm.slane %v308, 0
        %vm318 = vcmask 64512
        %v320 = vsel %vm318, %v309, 0
        %v323 = vsel %vm318, %v310, 0
        %v326 = vsel %vm318, %v311, 0
        %v329 = vsel %vm318, %v312, 0
        %v332 = vsel %vm318, %v313, 0
        %v335 = vsel %vm318, %v314, 0
        %v338 = vsel %vm318, %v315, 0
        %v341 = vsel %vm318, %v316, 0
        %343 = vmatpush.msra.mxu0 0.0
        %344 = vmatpush.msra.mxu0 0.0
        %345 = vmatpush.msra.mxu0 0.0
        %346 = vmatpush.msra.mxu0 0.0
        %347 = vmatpush.msra.mxu0 0.0
        %348 = vmatpush.msra.mxu0 0.0
        %349 = vmatpush.msra.mxu0 0.0
        %350 = vmatpush.msra.mxu0 0.0
        %351 = vmatpush.msra.mxu0 0.0
        %352 = vmatpush.msra.mxu0 0.0
        %353 = vmatpush.msra.mxu0 0.0
        %354 = vmatpush.msra.mxu0 0.0
        %355 = vmatpush.msra.mxu0 0.0
        %356 = vmatpush.msra.mxu0 0.0
        %357 = vmatpush.msra.mxu0 0.0
        %358 = vmatpush.msra.mxu0 %v303
        %359 = vmatmul.f32.gmra.mxu0 %v320
        %v360 = vpop.f32.mrf.mxu0
        %v361 = vadd.f32 %v317, %v360
        %362 = vmatmul.f32.gmra.mxu0 %v323
        %v363 = vpop.f32.mrf.mxu0
        %v364 = vadd.f32 %v317, %v363
        %365 = vmatmul.f32.gmra.mxu0 %v326
        %v366 = vpop.f32.mrf.mxu0
        %v367 = vadd.f32 %v317, %v366
        %368 = vmatmul.f32.gmra.mxu0 %v329
        %v369 = vpop.f32.mrf.mxu0
        %v370 = vadd.f32 %v317, %v369
        %371 = vmatmul.f32.gmra.mxu0 %v332
        %v372 = vpop.f32.mrf.mxu0
        %v373 = vadd.f32 %v317, %v372
        %374 = vmatmul.f32.gmra.mxu0 %v335
        %v375 = vpop.f32.mrf.mxu0
        %v376 = vadd.f32 %v317, %v375
        %377 = vmatmul.f32.gmra.mxu0 %v338
        %v378 = vpop.f32.mrf.mxu0
        %v379 = vadd.f32 %v317, %v378
        %380 = vmatmul.f32.gmra.mxu0 %v341
        %v381 = vpop.f32.mrf.mxu0
        %v382 = vadd.f32 %v317, %v381
        %383 = vdwg.mxu0
        %vm384 = vcmask 261120
        %v386 = vsel %vm384, 0.0, 0
        %388 = vmatpush.msra.mxu0 0.0
        %389 = vmatpush.msra.mxu0 0.0
        %390 = vmatpush.msra.mxu0 0.0
        %391 = vmatpush.msra.mxu0 0.0
        %392 = vmatpush.msra.mxu0 0.0
        %393 = vmatpush.msra.mxu0 0.0
        %394 = vmatpush.msra.mxu0 0.0
        %395 = vmatpush.msra.mxu0 0.0
        %396 = vmatpush.msra.mxu0 0.0
        %397 = vmatpush.msra.mxu0 0.0
        %398 = vmatpush.msra.mxu0 0.0
        %399 = vmatpush.msra.mxu0 0.0
        %400 = vmatpush.msra.mxu0 %v307
        %401 = vmatpush.msra.mxu0 %v306
        %402 = vmatpush.msra.mxu0 %v305
        %403 = vmatpush.msra.mxu0 %v304
        %404 = vmatmul.f32.gmra.mxu0 %v386
        %v405 = vpop.f32.mrf.mxu0
        %v406 = vadd.f32 0.0, %v405
        %407 = vdwg.mxu0
        %v408 = vadd.f32 %v361, %v406
        %v409 = vxor.u32 %v408, 2147483648
        %v410 = vmul.f32 %v409, 1.442695
        %v411 = vpow.pop %v410
        %v412 = vadd.f32 %v411, 1.0
        %v413 = vrcp.pop %v412
        %v414 = vmul.f32 %v412, %v413
        %v415 = vsub.f32 1.0, %v414
        %v416 = vmul.f32 %v413, %v415
        %v417 = vadd.f32 %v413, %v416
        %vm418 = vweird.f32 %v412
        %vm419 = vweird.f32 %v413
        %vm420 = vmor %vm418, %vm419
        %v421 = vsel %vm420, %v413, %v417
        %v422 = vand.u32 2147483647, %v412
        %vm423 = vcmp.eq.f32.partialorder %v422, 8.507059e+37
        %v424 = vand.u32 %v412, 2147483648
        %v425 = vor.u32 1.1754944e-38, %v424
        %v426 = vsel %vm423, %v425, %v421
        %v427 = vmul.f32 1.0, %v426
        %v428 = vmul.f32 %v427, 2.0
        %v429 = vsub.f32 %v428, 1.0
        %v430 = vmul.f32 %v427, 0.0
        %432 = vrot.lane.b32.xlu0 %v429, 64
        %v433 = vpop.permute.xlu0 %432
        %v435 = vmul.f32 %v427, %v433
        %437 = vrot.lane.b32.xlu0 %v435, 32
        %v438 = vpop.permute.xlu0 %437
        %v440 = vadd.f32 %v430, %v438
        %v441 = vtanh.pop %v440
        %443 = vrot.lane.b32.xlu0 %v441, 64
        %v444 = vpop.permute.xlu0 %443
        %v446 = vmul.f32 %v427, %v444
        %448 = vrot.lane.b32.xlu0 %v446, 32
        %v449 = vpop.permute.xlu0 %448
        %v450 = vsel %vm384, %v449, 0
        %452 = vmatpush.msra.mxu0 0.0
        %453 = vmatpush.msra.mxu0 0.0
        %454 = vmatpush.msra.mxu0 0.0
        %455 = vmatpush.msra.mxu0 0.0
        %456 = vmatpush.msra.mxu0 0.0
        %457 = vmatpush.msra.mxu0 0.0
        %458 = vmatpush.msra.mxu0 0.0
        %459 = vmatpush.msra.mxu0 0.0
        %460 = vmatpush.msra.mxu0 0.0
        %461 = vmatpush.msra.mxu0 0.0
        %462 = vmatpush.msra.mxu0 0.0
        %463 = vmatpush.msra.mxu0 0.0
        %464 = vmatpush.msra.mxu0 %v307
        %465 = vmatpush.msra.mxu0 %v306
        %466 = vmatpush.msra.mxu0 %v305
        %467 = vmatpush.msra.mxu0 %v304
        %468 = vmatmul.f32.gmra.mxu0 %v450
        %v469 = vpop.f32.mrf.mxu0
        %v470 = vadd.f32 0.0, %v469
        %471 = vdwg.mxu0
        %v472 = vadd.f32 %v364, %v470
        %v473 = vxor.u32 %v472, 2147483648
        %v474 = vmul.f32 %v473, 1.442695
        %v475 = vpow.pop %v474
        %v476 = vadd.f32 %v475, 1.0
        %v477 = vrcp.pop %v476
        %v478 = vmul.f32 %v476, %v477
        %v479 = vsub.f32 1.0, %v478
        %v480 = vmul.f32 %v477, %v479
        %v481 = vadd.f32 %v477, %v480
        %vm482 = vweird.f32 %v476
        %vm483 = vweird.f32 %v477
        %vm484 = vmor %vm482, %vm483
        %v485 = vsel %vm484, %v477, %v481
        %v486 = vand.u32 2147483647, %v476
        %vm487 = vcmp.eq.f32.partialorder %v486, 8.507059e+37
        %v488 = vand.u32 %v476, 2147483648
        %v489 = vor.u32 1.1754944e-38, %v488
        %v490 = vsel %vm487, %v489, %v485
        %v491 = vmul.f32 1.0, %v490
        %v492 = vmul.f32 %v491, 2.0
        %v493 = vsub.f32 %v492, 1.0
        %v494 = vmul.f32 %v491, %v440
        %496 = vrot.lane.b32.xlu0 %v493, 64
        %v497 = vpop.permute.xlu0 %496
        %v499 = vmul.f32 %v491, %v497
        %501 = vrot.lane.b32.xlu0 %v499, 32
        %v502 = vpop.permute.xlu0 %501
        %v504 = vadd.f32 %v494, %v502
        %v505 = vtanh.pop %v504
        %507 = vrot.lane.b32.xlu0 %v505, 64
        %v508 = vpop.permute.xlu0 %507
        %v510 = vmul.f32 %v491, %v508
        %512 = vrot.lane.b32.xlu0 %v510, 32
        %v513 = vpop.permute.xlu0 %512
        %v514 = vsel %vm384, %v513, 0
        %516 = vmatpush.msra.mxu0 0.0
        %517 = vmatpush.msra.mxu0 0.0
        %518 = vmatpush.msra.mxu0 0.0
        %519 = vmatpush.msra.mxu0 0.0
        %520 = vmatpush.msra.mxu0 0.0
        %521 = vmatpush.msra.mxu0 0.0
        %522 = vmatpush.msra.mxu0 0.0
        %523 = vmatpush.msra.mxu0 0.0
        %524 = vmatpush.msra.mxu0 0.0
        %525 = vmatpush.msra.mxu0 0.0
        %526 = vmatpush.msra.mxu0 0.0
        %527 = vmatpush.msra.mxu0 0.0
        %528 = vmatpush.msra.mxu0 %v307
        %529 = vmatpush.msra.mxu0 %v306
        %530 = vmatpush.msra.mxu0 %v305
        %531 = vmatpush.msra.mxu0 %v304
        %532 = vmatmul.f32.gmra.mxu0 %v514
        %v533 = vpop.f32.mrf.mxu0
        %v534 = vadd.f32 0.0, %v533
        %535 = vdwg.mxu0
        %v536 = vadd.f32 %v367, %v534
        %v537 = vxor.u32 %v536, 2147483648
        %v538 = vmul.f32 %v537, 1.442695
        %v539 = vpow.pop %v538
        %v540 = vadd.f32 %v539, 1.0
        %v541 = vrcp.pop %v540
        %v542 = vmul.f32 %v540, %v541
        %v543 = vsub.f32 1.0, %v542
        %v544 = vmul.f32 %v541, %v543
        %v545 = vadd.f32 %v541, %v544
        %vm546 = vweird.f32 %v540
        %vm547 = vweird.f32 %v541
        %vm548 = vmor %vm546, %vm547
        %v549 = vsel %vm548, %v541, %v545
        %v550 = vand.u32 2147483647, %v540
        %vm551 = vcmp.eq.f32.partialorder %v550, 8.507059e+37
        %v552 = vand.u32 %v540, 2147483648
        %v553 = vor.u32 1.1754944e-38, %v552
        %v554 = vsel %vm551, %v553, %v549
        %v555 = vmul.f32 1.0, %v554
        %v556 = vmul.f32 %v555, 2.0
        %v557 = vsub.f32 %v556, 1.0
        %v558 = vmul.f32 %v555, %v504
        %560 = vrot.lane.b32.xlu0 %v557, 64
        %v561 = vpop.permute.xlu0 %560
        %v563 = vmul.f32 %v555, %v561
        %565 = vrot.lane.b32.xlu0 %v563, 32
        %v566 = vpop.permute.xlu0 %565
        %v568 = vadd.f32 %v558, %v566
        %v569 = vtanh.pop %v568
        %571 = vrot.lane.b32.xlu0 %v569, 64
        %v572 = vpop.permute.xlu0 %571
        %v574 = vmul.f32 %v555, %v572
        %576 = vrot.lane.b32.xlu0 %v574, 32
        %v577 = vpop.permute.xlu0 %576
        %v578 = vsel %vm384, %v577, 0
        %580 = vmatpush.msra.mxu0 0.0
        %581 = vmatpush.msra.mxu0 0.0
        %582 = vmatpush.msra.mxu0 0.0
        %583 = vmatpush.msra.mxu0 0.0
        %584 = vmatpush.msra.mxu0 0.0
        %585 = vmatpush.msra.mxu0 0.0
        %586 = vmatpush.msra.mxu0 0.0
        %587 = vmatpush.msra.mxu0 0.0
        %588 = vmatpush.msra.mxu0 0.0
        %589 = vmatpush.msra.mxu0 0.0
        %590 = vmatpush.msra.mxu0 0.0
        %591 = vmatpush.msra.mxu0 0.0
        %592 = vmatpush.msra.mxu0 %v307
        %593 = vmatpush.msra.mxu0 %v306
        %594 = vmatpush.msra.mxu0 %v305
        %595 = vmatpush.msra.mxu0 %v304
        %596 = vmatmul.f32.gmra.mxu0 %v578
        %v597 = vpop.f32.mrf.mxu0
        %v598 = vadd.f32 0.0, %v597
        %599 = vdwg.mxu0
        %v600 = vadd.f32 %v370, %v598
        %v601 = vxor.u32 %v600, 2147483648
        %v602 = vmul.f32 %v601, 1.442695
        %v603 = vpow.pop %v602
        %v604 = vadd.f32 %v603, 1.0
        %v605 = vrcp.pop %v604
        %v606 = vmul.f32 %v604, %v605
        %v607 = vsub.f32 1.0, %v606
        %v608 = vmul.f32 %v605, %v607
        %v609 = vadd.f32 %v605, %v608
        %vm610 = vweird.f32 %v604
        %vm611 = vweird.f32 %v605
        %vm612 = vmor %vm610, %vm611
        %v613 = vsel %vm612, %v605, %v609
        %v614 = vand.u32 2147483647, %v604
        %vm615 = vcmp.eq.f32.partialorder %v614, 8.507059e+37
        %v616 = vand.u32 %v604, 2147483648
        %v617 = vor.u32 1.1754944e-38, %v616
        %v618 = vsel %vm615, %v617, %v613
        %v619 = vmul.f32 1.0, %v618
        %v620 = vmul.f32 %v619, 2.0
        %v621 = vsub.f32 %v620, 1.0
        %v622 = vmul.f32 %v619, %v568
        %624 = vrot.lane.b32.xlu0 %v621, 64
        %v625 = vpop.permute.xlu0 %624
        %v627 = vmul.f32 %v619, %v625
        %629 = vrot.lane.b32.xlu0 %v627, 32
        %v630 = vpop.permute.xlu0 %629
        %v632 = vadd.f32 %v622, %v630
        %v633 = vtanh.pop %v632
        %635 = vrot.lane.b32.xlu0 %v633, 64
        %v636 = vpop.permute.xlu0 %635
        %v638 = vmul.f32 %v619, %v636
        %640 = vrot.lane.b32.xlu0 %v638, 32
        %v641 = vpop.permute.xlu0 %640
        %v642 = vsel %vm384, %v641, 0
        %644 = vmatpush.msra.mxu0 0.0
        %645 = vmatpush.msra.mxu0 0.0
        %646 = vmatpush.msra.mxu0 0.0
        %647 = vmatpush.msra.mxu0 0.0
        %648 = vmatpush.msra.mxu0 0.0
        %649 = vmatpush.msra.mxu0 0.0
        %650 = vmatpush.msra.mxu0 0.0
        %651 = vmatpush.msra.mxu0 0.0
        %652 = vmatpush.msra.mxu0 0.0
        %653 = vmatpush.msra.mxu0 0.0
        %654 = vmatpush.msra.mxu0 0.0
        %655 = vmatpush.msra.mxu0 0.0
        %656 = vmatpush.msra.mxu0 %v307
        %657 = vmatpush.msra.mxu0 %v306
        %658 = vmatpush.msra.mxu0 %v305
        %659 = vmatpush.msra.mxu0 %v304
        %660 = vmatmul.f32.gmra.mxu0 %v642
        %v661 = vpop.f32.mrf.mxu0
        %v662 = vadd.f32 0.0, %v661
        %663 = vdwg.mxu0
        %v664 = vadd.f32 %v373, %v662
        %v665 = vxor.u32 %v664, 2147483648
        %v666 = vmul.f32 %v665, 1.442695
        %v667 = vpow.pop %v666
        %v668 = vadd.f32 %v667, 1.0
        %v669 = vrcp.pop %v668
        %v670 = vmul.f32 %v668, %v669
        %v671 = vsub.f32 1.0, %v670
        %v672 = vmul.f32 %v669, %v671
        %v673 = vadd.f32 %v669, %v672
        %vm674 = vweird.f32 %v668
        %vm675 = vweird.f32 %v669
        %vm676 = vmor %vm674, %vm675
        %v677 = vsel %vm676, %v669, %v673
        %v678 = vand.u32 2147483647, %v668
        %vm679 = vcmp.eq.f32.partialorder %v678, 8.507059e+37
        %v680 = vand.u32 %v668, 2147483648
        %v681 = vor.u32 1.1754944e-38, %v680
        %v682 = vsel %vm679, %v681, %v677
        %v683 = vmul.f32 1.0, %v682
        %v684 = vmul.f32 %v683, 2.0
        %v685 = vsub.f32 %v684, 1.0
        %v686 = vmul.f32 %v683, %v632
        %688 = vrot.lane.b32.xlu0 %v685, 64
        %v689 = vpop.permute.xlu0 %688
        %v691 = vmul.f32 %v683, %v689
        %693 = vrot.lane.b32.xlu0 %v691, 32
        %v694 = vpop.permute.xlu0 %693
        %v696 = vadd.f32 %v686, %v694
        %v697 = vtanh.pop %v696
        %699 = vrot.lane.b32.xlu0 %v697, 64
        %v700 = vpop.permute.xlu0 %699
        %v702 = vmul.f32 %v683, %v700
        %704 = vrot.lane.b32.xlu0 %v702, 32
        %v705 = vpop.permute.xlu0 %704
        %v706 = vsel %vm384, %v705, 0
        %708 = vmatpush.msra.mxu0 0.0
        %709 = vmatpush.msra.mxu0 0.0
        %710 = vmatpush.msra.mxu0 0.0
        %711 = vmatpush.msra.mxu0 0.0
        %712 = vmatpush.msra.mxu0 0.0
        %713 = vmatpush.msra.mxu0 0.0
        %714 = vmatpush.msra.mxu0 0.0
        %715 = vmatpush.msra.mxu0 0.0
        %716 = vmatpush.msra.mxu0 0.0
        %717 = vmatpush.msra.mxu0 0.0
        %718 = vmatpush.msra.mxu0 0.0
        %719 = vmatpush.msra.mxu0 0.0
        %720 = vmatpush.msra.mxu0 %v307
        %721 = vmatpush.msra.mxu0 %v306
        %722 = vmatpush.msra.mxu0 %v305
        %723 = vmatpush.msra.mxu0 %v304
        %724 = vmatmul.f32.gmra.mxu0 %v706
        %v725 = vpop.f32.mrf.mxu0
        %v726 = vadd.f32 0.0, %v725
        %727 = vdwg.mxu0
        %v728 = vadd.f32 %v376, %v726
        %v729 = vxor.u32 %v728, 2147483648
        %v730 = vmul.f32 %v729, 1.442695
        %v731 = vpow.pop %v730
        %v732 = vadd.f32 %v731, 1.0
        %v733 = vrcp.pop %v732
        %v734 = vmul.f32 %v732, %v733
        %v735 = vsub.f32 1.0, %v734
        %v736 = vmul.f32 %v733, %v735
        %v737 = vadd.f32 %v733, %v736
        %vm738 = vweird.f32 %v732
        %vm739 = vweird.f32 %v733
        %vm740 = vmor %vm738, %vm739
        %v741 = vsel %vm740, %v733, %v737
        %v742 = vand.u32 2147483647, %v732
        %vm743 = vcmp.eq.f32.partialorder %v742, 8.507059e+37
        %v744 = vand.u32 %v732, 2147483648
        %v745 = vor.u32 1.1754944e-38, %v744
        %v746 = vsel %vm743, %v745, %v741
        %v747 = vmul.f32 1.0, %v746
        %v748 = vmul.f32 %v747, 2.0
        %v749 = vsub.f32 %v748, 1.0
        %v750 = vmul.f32 %v747, %v696
        %752 = vrot.lane.b32.xlu0 %v749, 64
        %v753 = vpop.permute.xlu0 %752
        %v755 = vmul.f32 %v747, %v753
        %757 = vrot.lane.b32.xlu0 %v755, 32
        %v758 = vpop.permute.xlu0 %757
        %v760 = vadd.f32 %v750, %v758
        %v761 = vtanh.pop %v760
        %763 = vrot.lane.b32.xlu0 %v761, 64
        %v764 = vpop.permute.xlu0 %763
        %v766 = vmul.f32 %v747, %v764
        %768 = vrot.lane.b32.xlu0 %v766, 32
        %v769 = vpop.permute.xlu0 %768
        %v770 = vsel %vm384, %v769, 0
        %772 = vmatpush.msra.mxu0 0.0
        %773 = vmatpush.msra.mxu0 0.0
        %774 = vmatpush.msra.mxu0 0.0
        %775 = vmatpush.msra.mxu0 0.0
        %776 = vmatpush.msra.mxu0 0.0
        %777 = vmatpush.msra.mxu0 0.0
        %778 = vmatpush.msra.mxu0 0.0
        %779 = vmatpush.msra.mxu0 0.0
        %780 = vmatpush.msra.mxu0 0.0
        %781 = vmatpush.msra.mxu0 0.0
        %782 = vmatpush.msra.mxu0 0.0
        %783 = vmatpush.msra.mxu0 0.0
        %784 = vmatpush.msra.mxu0 %v307
        %785 = vmatpush.msra.mxu0 %v306
        %786 = vmatpush.msra.mxu0 %v305
        %787 = vmatpush.msra.mxu0 %v304
        %788 = vmatmul.f32.gmra.mxu0 %v770
        %v789 = vpop.f32.mrf.mxu0
        %v790 = vadd.f32 0.0, %v789
        %791 = vdwg.mxu0
        %v792 = vadd.f32 %v379, %v790
        %v793 = vxor.u32 %v792, 2147483648
        %v794 = vmul.f32 %v793, 1.442695
        %v795 = vpow.pop %v794
        %v796 = vadd.f32 %v795, 1.0
        %v797 = vrcp.pop %v796
        %v798 = vmul.f32 %v796, %v797
        %v799 = vsub.f32 1.0, %v798
        %v800 = vmul.f32 %v797, %v799
        %v801 = vadd.f32 %v797, %v800
        %vm802 = vweird.f32 %v796
        %vm803 = vweird.f32 %v797
        %vm804 = vmor %vm802, %vm803
        %v805 = vsel %vm804, %v797, %v801
        %v806 = vand.u32 2147483647, %v796
        %vm807 = vcmp.eq.f32.partialorder %v806, 8.507059e+37
        %v808 = vand.u32 %v796, 2147483648
        %v809 = vor.u32 1.1754944e-38, %v808
        %v810 = vsel %vm807, %v809, %v805
        %v811 = vmul.f32 1.0, %v810
        %v812 = vmul.f32 %v811, 2.0
        %v813 = vsub.f32 %v812, 1.0
        %v814 = vmul.f32 %v811, %v760
        %816 = vrot.lane.b32.xlu0 %v813, 64
        %v817 = vpop.permute.xlu0 %816
        %v819 = vmul.f32 %v811, %v817
        %821 = vrot.lane.b32.xlu0 %v819, 32
        %v822 = vpop.permute.xlu0 %821
        %v824 = vadd.f32 %v814, %v822
        %v825 = vtanh.pop %v824
        %827 = vrot.lane.b32.xlu0 %v825, 64
        %v828 = vpop.permute.xlu0 %827
        %v830 = vmul.f32 %v811, %v828
        %832 = vrot.lane.b32.xlu0 %v830, 32
        %v833 = vpop.permute.xlu0 %832
        %v834 = vsel %vm384, %v833, 0
        %836 = vmatpush.msra.mxu0 0.0
        %837 = vmatpush.msra.mxu0 0.0
        %838 = vmatpush.msra.mxu0 0.0
        %839 = vmatpush.msra.mxu0 0.0
        %840 = vmatpush.msra.mxu0 0.0
        %841 = vmatpush.msra.mxu0 0.0
        %842 = vmatpush.msra.mxu0 0.0
        %843 = vmatpush.msra.mxu0 0.0
        %844 = vmatpush.msra.mxu0 0.0
        %845 = vmatpush.msra.mxu0 0.0
        %846 = vmatpush.msra.mxu0 0.0
        %847 = vmatpush.msra.mxu0 0.0
        %848 = vmatpush.msra.mxu0 %v307
        %849 = vmatpush.msra.mxu0 %v306
        %850 = vmatpush.msra.mxu0 %v305
        %851 = vmatpush.msra.mxu0 %v304
        %852 = vmatmul.f32.gmra.mxu0 %v834
        %v853 = vpop.f32.mrf.mxu0
        %v854 = vadd.f32 0.0, %v853
        %855 = vdwg.mxu0
        %v856 = vadd.f32 %v382, %v854
        %v857 = vxor.u32 %v856, 2147483648
        %v858 = vmul.f32 %v857, 1.442695
        %v859 = vpow.pop %v858
        %v860 = vadd.f32 %v859, 1.0
        %v861 = vrcp.pop %v860
        %v862 = vmul.f32 %v860, %v861
        %v863 = vsub.f32 1.0, %v862
        %v864 = vmul.f32 %v861, %v863
        %v865 = vadd.f32 %v861, %v864
        %vm866 = vweird.f32 %v860
        %vm867 = vweird.f32 %v861
        %vm868 = vmor %vm866, %vm867
        %v869 = vsel %vm868, %v861, %v865
        %v870 = vand.u32 2147483647, %v860
        %vm871 = vcmp.eq.f32.partialorder %v870, 8.507059e+37
        %v872 = vand.u32 %v860, 2147483648
        %v873 = vor.u32 1.1754944e-38, %v872
        %v874 = vsel %vm871, %v873, %v869
        %v875 = vmul.f32 1.0, %v874
        %v876 = vmul.f32 %v875, 2.0
        %v877 = vsub.f32 %v876, 1.0
        %v878 = vmul.f32 %v875, %v824
        %880 = vrot.lane.b32.xlu0 %v877, 64
        %v881 = vpop.permute.xlu0 %880
        %v883 = vmul.f32 %v875, %v881
        %885 = vrot.lane.b32.xlu0 %v883, 32
        %v886 = vpop.permute.xlu0 %885
        %v888 = vadd.f32 %v878, %v886
        %v889 = vtanh.pop %v888
        %891 = vrot.lane.b32.xlu0 %v889, 64
        %v892 = vpop.permute.xlu0 %891
        %v894 = vmul.f32 %v875, %v892
        %v895 = vld [vmem:[%s298] sm:$0xff]
        %v896 = vld [vmem:[%s4 + $0x1] sm:$0x1]
        %898 = vset.pattern.permute.xlu0 0
        %899 = vperm.xlu0 %898, %v895
        %v900 = vpop.permute.xlu0 %899
        %v902 = vperm.slane %v896, 0
        %v903 = vmul.f32 %v900, %v902
        %v904 = vld [vmem:[%s4 + $0x2] sm:$0x1]
        %v905 = vperm.slane %v904, 0
        %v906 = vadd.f32 %v903, %v905
        %v907 = vlaneseq
        %v908 = vand.u32 %v907, 127
        %vm909 = vcmp.lt.s32.totalorder %v908, 8
        %v910 = vand.u32 2147483647, %v906
        %vm911 = vcmp.le.f32.partialorder %v910, 0.7853982
        %vm912 = vcmp.lt.s32.totalorder %v906, 0
        %v913 = vand.u32 %v906, 2139095040
        %v914 = vshrl.u32 %v913, 23
        %v915 = vsub.s32 %v914, 127
        %v916 = vand.u32 2147483647, %v906
        %v917 = vand.u32 %v916, 8388607
        %v918 = vor.u32 %v917, 8388608
        %v919 = vsub.s32 0, %v918
        %v920 = vadd.s32 %v915, 1
        %vm921 = vcmp.gt.s32.totalorder %v920, 0
        %v922 = vsel %vm921, %v920, 0
        %v923 = vshrl.u32 %v922, 5
        %v924 = vand.u32 %v922, 31
        %v925 = vsub.s32 32, %v924
        %v926 = vshrl.u32 683565275, %v925
        %v927 = vshll.u32 683565275, %v924
        %v928 = vshrl.u32 2475754826, %v925
        %v929 = vor.u32 %v927, %v928
        %v930 = vshll.u32 2475754826, %v924
        %v931 = vshrl.u32 2131351028, %v925
        %v932 = vor.u32 %v930, %v931
        %v933 = vshll.u32 2131351028, %v924
        %v934 = vshrl.u32 2102212464, %v925
        %v935 = vor.u32 %v933, %v934
        %v936 = vshll.u32 2102212464, %v924
        %v937 = vshrl.u32 920167782, %v925
        %v938 = vor.u32 %v936, %v937
        %v939 = vshll.u32 920167782, %v924
        %v940 = vshrl.u32 1326507024, %v925
        %v941 = vor.u32 %v939, %v940
        %vm942 = vcmp.lt.s32.totalorder %v923, 1
        %vm943 = vcmp.lt.s32.totalorder %v923, 2
        %vm944 = vcmp.lt.s32.totalorder %v923, 3
        %vm945 = vcmp.lt.s32.totalorder %v923, 4
        %v946 = vsel %vm942, %v926, %v929
        %v947 = vsel %vm945, %v935, 2102212464
        %v948 = vsel %vm944, %v932, %v947
        %v949 = vsel %vm943, %v946, %v948
        %v950 = vsel %vm942, %v929, %v932
        %v951 = vsel %vm945, %v938, 920167782
        %v952 = vsel %vm944, %v935, %v951
        %v953 = vsel %vm943, %v950, %v952
        %v954 = vsel %vm942, %v932, %v935
        %v955 = vsel %vm945, %v941, 1326507024
        %v956 = vsel %vm944, %v938, %v955
        %v957 = vsel %vm943, %v954, %v956
        %v958 = vshll.u32 %v918, 8
        %v959 = vand.u32 %v958, 65535
        %v960 = vshrl.u32 %v958, 16
        %v961 = vand.u32 %v957, 65535
        %v962 = vshrl.u32 %v957, 16
        %v963 = vmul.u32 %v959, %v961
        %v964 = vmul.u32 %v959, %v962
        %v965 = vmul.u32 %v960, %v961
        %v966 = vmul.u32 %v960, %v962
        %v967 = vshll.u32 %v964, 16
        %v968 = vshrl.u32 %v964, 16
        %v969 = vshll.u32 %v965, 16
        %v970 = vshrl.u32 %v965, 16
        %vm971 = vc.u32 %v963, %v967
        %v972 = vsel %vm971, 1, 0
        %v973 = vadd.s32 %v963, %v967
        %v974 = vadd.s32 %v966, %v972
        %vm975 = vc.u32 %v973, %v969
        %v976 = vsel %vm975, 1, 0
        %v977 = vadd.s32 %v973, %v969
        %v978 = vadd.s32 %v974, %v976
        %v979 = vadd.s32 %v978, %v968
        %v980 = vadd.s32 %v979, %v970
        %v981 = vand.u32 %v958, 65535
        %v982 = vshrl.u32 %v958, 16
        %v983 = vand.u32 %v953, 65535
        %v984 = vshrl.u32 %v953, 16
        %v985 = vmul.u32 %v981, %v983
        %v986 = vmul.u32 %v981, %v984
        %v987 = vmul.u32 %v982, %v983
        %v988 = vmul.u32 %v982, %v984
        %v989 = vshll.u32 %v986, 16
        %v990 = vshrl.u32 %v986, 16
        %v991 = vshll.u32 %v987, 16
        %v992 = vshrl.u32 %v987, 16
        %vm993 = vc.u32 %v985, %v989
        %v994 = vsel %vm993, 1, 0
        %v995 = vadd.s32 %v985, %v989
        %v996 = vadd.s32 %v988, %v994
        %vm997 = vc.u32 %v995, %v991
        %v998 = vsel %vm997, 1, 0
        %v999 = vadd.s32 %v995, %v991
        %v1000 = vadd.s32 %v996, %v998
        %v1001 = vadd.s32 %v1000, %v990
        %v1002 = vadd.s32 %v1001, %v992
        %v1003 = vmul.u32 %v958, %v949
        %v1004 = vadd.s32 %v980, %v999
        %vm1005 = vc.u32 %v980, %v999
        %v1006 = vadd.s32 %v1002, 1
        %v1007 = vsel %vm1005, %v1006, %v1002
        %v1008 = vadd.s32 %v1003, %v1007
        %v1009 = vadd.s32 %v1008, 536870912
        %v1010 = vshrl.u32 %v1009, 30
        %v1011 = vshll.u32 %v1010, 30
        %v1012 = vsub.s32 %v1008, %v1011
        %vm1013 = vcmp.lt.s32.totalorder %v1012, 0
        %v1014 = vsub.s32 0, %v1012
        %v1015 = vsel %vm1013, %v1014, %v1012
        %v1016 = vclz %v1015
        %v1017 = vsub.s32 %v1016, 2
        %vm1018 = vcmp.gt.s32.totalorder 0, %v1017
        %v1019 = vsel %vm1018, 0, %v1017
        %v1020 = vsub.s32 32, %v1019
        %v1021 = vshll.u32 %v1012, %v1019
        %v1022 = vshrl.u32 %v1004, %v1020
        %v1023 = vor.u32 %v1021, %v1022
        %v1024 = vsub.s32 4294967266, %v1019
        %v1025 = vadd.s32 %v1024, 127
        %v1026 = vshll.u32 %v1025, 23
        %v1027 = vor.u32 4788187, %v1026
        %v1028 = vand.u32 2147483647, %v1027
        %v1030 = vcvt.s32.f32 %v1023
        %v1031 = vmul.f32 %v1030, %v1028
        %v1032 = vxor.u32 %v1031, 2147483648
        %v1033 = vsel %vm912, %v1032, %v1031
        %v1034 = vsub.s32 4, %v1010
        %v1035 = vsel %vm912, %v1034, %v1010
        %v1036 = vsel %vm911, %v906, %v1033
        %v1037 = vsel %vm911, 0, %v1035
        %v1038 = vmul.f32 %v1036, %v1036
        %v1039 = vmul.f32 %v1038, -0.001358992
        %v1040 = vadd.f32 %v1039, 0.041655596
        %v1041 = vmul.f32 %v1038, %v1040
        %v1042 = vadd.f32 %v1041, -0.4999988
        %v1043 = vmul.f32 %v1038, %v1042
        %v1044 = vadd.f32 1.0, %v1043
        %v1045 = vmul.f32 %v1036, %v1036
        %v1046 = vmul.f32 %v1045, -0.00019511016
        %v1047 = vadd.f32 %v1046, 0.008332121
        %v1048 = vmul.f32 %v1045, %v1047
        %v1049 = vadd.f32 %v1048, -0.16666654
        %v1050 = vmul.f32 %v1045, %v1049
        %v1051 = vadd.f32 %v1050, 1.0
        %v1052 = vmul.f32 %v1051, %v1036
        %vm1053 = vweird.f32 %v906
        %v1054 = vadd.s32 %v1037, 3
        %v1055 = vand.u32 %v1054, 3
        %vm1056 = vcmp.lt.s32.totalorder %v1055, 2
        %vm1057 = vcmp.eq.s32.totalorder %v1055, 0
        %v1058 = vxor.u32 %v1052, 2147483648
        %v1059 = vsel %vm1057, %v1044, %v1058
        %vm1060 = vcmp.eq.s32.totalorder %v1055, 2
        %v1061 = vxor.u32 %v1044, 2147483648
        %v1062 = vsel %vm1060, %v1061, %v1052
        %v1063 = vsel %vm1056, %v1059, %v1062
        %v1064 = vsel %vm1053, nan, %v1063
        %v1065 = vsel %vm909, %v906, %v1064
        %v1066 = vld [vmem:[%s3] sm:$0xff]
        %v1067 = vld [vmem:[%s3 + $0x8] sm:$0xff]
        %v1068 = vld [vmem:[%s4 + $0x3] sm:$0x1]
        %v1069 = vperm.slane %v1068, 0
        %vm1070 = vcmask 130048
        %v1072 = vsel %vm1070, %v1065, 0
        %1074 = vmatpush.msra.mxu0 0.0
        %1075 = vmatpush.msra.mxu0 0.0
        %1076 = vmatpush.msra.mxu0 0.0
        %1077 = vmatpush.msra.mxu0 0.0
        %1078 = vmatpush.msra.mxu0 0.0
        %1079 = vmatpush.msra.mxu0 0.0
        %1080 = vmatpush.msra.mxu0 0.0
        %1081 = vmatpush.msra.mxu0 0.0
        %1082 = vmatpush.msra.mxu0 0.0
        %1083 = vmatpush.msra.mxu0 0.0
        %1084 = vmatpush.msra.mxu0 0.0
        %1085 = vmatpush.msra.mxu0 0.0
        %1086 = vmatpush.msra.mxu0 0.0
        %1087 = vmatpush.msra.mxu0 0.0
        %1088 = vmatpush.msra.mxu0 %v1067
        %1089 = vmatpush.msra.mxu0 %v1066
        %1090 = vmatmul.f32.gmra.mxu0 %v1072
        %v1091 = vpop.f32.mrf.mxu0
        %v1092 = vadd.f32 %v1069, %v1091
        %1093 = vdwg.mxu0
        %v1094 = vld [vmem:[%s4 + $0x4] sm:$0x1]
        %v1095 = vperm.slane %v1094, 0
        %1097 = vrot.lane.b32.xlu0 %v1095, 96
        %v1098 = vpop.permute.xlu0 %1097
        %v1100 = vmul.f32 %v894, %v1098
        %v1101 = vld [vmem:[%s4 + $0x5] sm:$0x1]
        %v1102 = vperm.slane %v1101, 0
        %v1103 = vmul.f32 %v1092, %v1102
        %1105 = vrot.lane.b32.xlu0 %v1103, 96
        %v1106 = vpop.permute.xlu0 %1105
        %v1108 = vadd.f32 %v1100, %v1106
        %1110 = vrot.lane.b32.xlu0 %v1108, 32
        %v1111 = vpop.permute.xlu0 %1110
        %v1113 = vsel %vm384, %v1111, 0.0
        %1114 = vadd.xlane.f32.xlu0 %v1113
        %v1115 = vpop.xlane.xlu0 %1114
        %v1116 = vld [vmem:[%s4 + $0x6] sm:$0x1]
        %v1117 = vperm.slane %v1116, 0
        %v1118 = vadd.f32 %v1115, %v1117
        %vm1119 = vcmask 7168
        %1120 = vst.msk [vmem:[%s302] sm:$0xff] %vm1119, %v1118
        %p1121 = scmp.lt.s32.totalorder %s16, 1
        %s1122 = scalar_select %p1121, %s16, 1
        %s1123 = smul.addr %s1122, 8
        %s1124 = scalar_lea.vmem %s5, %s1123
        // Predicated region
        $region79: #{tpu_custom_call.1} parent=73 // pred_check
          %p1125 = pneg %p149
        $region80: #{tpu_custom_call.1} parent=73 // pred_check_branch
          %1127 = sbr.rel (%p1125) target = $region82
        $region81: #{tpu_custom_call.1} parent=73 // pred_region
          _
        $region82: #{tpu_custom_call.1} parent=73 // pred_fallthru
          _
      $region74: #{tpu_custom_call.1} parent=5 // pred_fallthru
        _
      %p1128 = scmp.le.s32.totalorder 2, %s11
      // Predicated region
      $region83: #{tpu_custom_call.1} parent=5 // pred_check
        %p1129 = pneg %p1128
      $region84: #{tpu_custom_call.1} parent=5 // pred_check_branch
        %1131 = sbr.rel (%p1129) target = $region86
      $region85: #{tpu_custom_call.1} parent=5 // pred_region
        %s1132 = ssub.s32 %s11, 2
        // Predicated region
        $region87: #{tpu_custom_call.1} parent=85 // pred_check
          %p1133 = pneg %p155
        $region88: #{tpu_custom_call.1} parent=85 // pred_check_branch
          %1135 = sbr.rel (%p1133) target = $region90
        $region89: #{tpu_custom_call.1} parent=85 // pred_region
          %p1136 = scmp.lt.s32.totalorder %s17, 1
          %s1137 = scalar_select %p1136, %s17, 1
          %s1138 = smul.addr %s1137, 8
          %s1139 = scalar_lea.vmem %s5, %s1138
        $region90: #{tpu_custom_call.1} parent=85 // pred_fallthru
          _
      $region86: #{tpu_custom_call.1} parent=5 // pred_fallthru
        _
    $region6: #{tpu_custom_call.1} parent=1 // loop_footer
      %s15 = sadd.s32 1, %s11
    $region7: #{tpu_custom_call.1} parent=1 // loop_footer_branch
      %10 = sbr.rel target = $region3
    $region8: #{tpu_custom_call.1} parent=1 // loop_exit
      _

</llo_original>
